<compile_context>
chip_gen: v5e
topology: v5e:2x2
jax: 0.10.0
libtpu: 0.0.40
codegen_flags: <defaults>
</compile_context>

<pallas_src>
import functools
import math

import jax
import jax.numpy as jnp
from jax import lax
from jax.experimental import pallas as pl
from jax.experimental.pallas import tpu as pltpu

# Tile targets (sized so double-buffered tiles fit v7x's 64 MiB VMEM; also fine
# on v5e/v6e). Multiples of (16, 128) for bf16 sublane/lane alignment.
_TM = 256            # row (token) tile
_TN = 512            # output-feature tile (lane-dense)
_TK = 512            # contraction tile
_TKV = 256           # KV tile for flash attention
_VMEM_LIMIT = 48 * 1024 * 1024


# -----------------------------------------------------------------------------
# small helpers
# -----------------------------------------------------------------------------
def _ceil_to(x, m):
    return (x + m - 1) // m * m


def _tile(n, target, align):
    """Pick a tile size and the padded extent for a dimension of size n."""
    n_al = _ceil_to(n, align)
    if n_al <= target:
        return n_al, n_al                    # single full (padded) block
    if n_al % target == 0:
        return target, n_al
    return target, _ceil_to(n_al, target)


def _pad_to(x, shape):
    pads = [(0, t - s) for s, t in zip(x.shape, shape)]
    if any(p[1] for p in pads):
        return jnp.pad(x, pads)
    return x


# -----------------------------------------------------------------------------
# Pallas kernels
# -----------------------------------------------------------------------------
def _norm_matmul_kernel(x_ref, g_ref, w_ref, o_ref, *, eps):
    # fused RMSNorm (f32) prologue + projection (bf16 MXU, f32 accum)
    x = x_ref[...].astype(jnp.float32)                       # (tm, D)
    ms = jnp.mean(x * x, axis=-1, keepdims=True)
    xn = x * lax.rsqrt(ms + eps) * g_ref[...].astype(jnp.float32)
    o_ref[...] = jnp.dot(xn.astype(w_ref.dtype), w_ref[...],
                         preferred_element_type=jnp.float32).astype(o_ref.dtype)


def _norm_swiglu_kernel(x_ref, g_ref, w1_ref, w3_ref, o_ref, *, eps):
    # fused RMSNorm + SiLU(x @ w1) * (x @ w3)
    x = x_ref[...].astype(jnp.float32)                       # (tm, D)
    ms = jnp.mean(x * x, axis=-1, keepdims=True)
    xn = (x * lax.rsqrt(ms + eps) * g_ref[...].astype(jnp.float32)).astype(w1_ref.dtype)
    h1 = jnp.dot(xn, w1_ref[...], preferred_element_type=jnp.float32)
    h3 = jnp.dot(xn, w3_ref[...], preferred_element_type=jnp.float32)
    o_ref[...] = (h1 * jax.nn.sigmoid(h1) * h3).astype(o_ref.dtype)


def _matmul_residual_kernel(x_ref, w_ref, r_ref, o_ref, acc_ref):
    # tiled matmul with K-axis accumulation and fused residual-add epilogue
    @pl.when(pl.program_id(2) == 0)
    def _():
        acc_ref[...] = jnp.zeros_like(acc_ref)

    acc_ref[...] += jnp.dot(x_ref[...], w_ref[...],
                            preferred_element_type=jnp.float32)

    @pl.when(pl.program_id(2) == pl.num_programs(2) - 1)
    def _():
        o_ref[...] = (acc_ref[...] + r_ref[...].astype(jnp.float32)).astype(o_ref.dtype)


def _flash_attn_kernel(q_ref, k_ref, v_ref, o_ref, m_ref, l_ref, acc_ref, *, scale):
    # online-softmax causal attention over KV blocks (grid axis 2, "arbitrary")
    kb = pl.program_id(2)

    @pl.when(kb == 0)
    def _():
        m_ref[...] = jnp.full(m_ref.shape, -1e30, dtype=jnp.float32)
        l_ref[...] = jnp.zeros_like(l_ref)
        acc_ref[...] = jnp.zeros_like(acc_ref)

    q = q_ref[0, 0]                                          # (S, hd)
    k = k_ref[0, 0]                                          # (tkv, hd)
    v = v_ref[0, 0]                                          # (tkv, hd)
    s_q, tkv = q.shape[0], k.shape[0]

    # contract last dims directly on the MXU (no explicit K transpose)
    s = lax.dot_general(q, k, (((1,), (1,)), ((), ())),
                        preferred_element_type=jnp.float32) * scale   # (S, tkv)

    qpos = lax.broadcasted_iota(jnp.int32, (s_q, tkv), 0)
    kpos = lax.broadcasted_iota(jnp.int32, (s_q, tkv), 1) + kb * tkv
    s = jnp.where(kpos <= qpos, s, -1e30)                    # causal mask (finite)

    m_prev = m_ref[...]
    m_new = jnp.maximum(m_prev, jnp.max(s, axis=-1, keepdims=True))
    alpha = jnp.exp(m_prev - m_new)
    p = jnp.exp(s - m_new)
    l_ref[...] = alpha * l_ref[...] + jnp.sum(p, axis=-1, keepdims=True)
    acc_ref[...] = alpha * acc_ref[...] + jnp.dot(p.astype(v.dtype), v,
                                                  preferred_element_type=jnp.float32)
    m_ref[...] = m_new

    @pl.when(kb == pl.num_programs(2) - 1)
    def _():
        o_ref[0, 0] = (acc_ref[...] *
                       pl.reciprocal(l_ref[...], approx=True)).astype(o_ref.dtype)


# -----------------------------------------------------------------------------
# Pallas wrappers (tiling, padding, grids)
# -----------------------------------------------------------------------------
def pallas_norm_matmul(x, gamma, w, *, eps, out_dtype, tn_target=_TN):
    """RMSNorm(x) @ w  — grid (M, N); D kept whole inside the block."""
    n, d = x.shape
    _, m = w.shape
    tm, n_pad = _tile(n, _TM, 16)
    tn, m_pad = _tile(m, tn_target, 128)
    x_p = _pad_to(x, (n_pad, d))
    w_p = _pad_to(w, (d, m_pad))
    g2 = gamma.reshape(1, d)
    out = pl.pallas_call(
        functools.partial(_norm_matmul_kernel, eps=eps),
        out_shape=jax.ShapeDtypeStruct((n_pad, m_pad), out_dtype),
        grid=(n_pad // tm, m_pad // tn),
        in_specs=[
            pl.BlockSpec((tm, d), lambda i, j: (i, 0)),
            pl.BlockSpec((1, d), lambda i, j: (0, 0)),
            pl.BlockSpec((d, tn), lambda i, j: (0, j)),
        ],
        out_specs=pl.BlockSpec((tm, tn), lambda i, j: (i, j)),
        compiler_params=pltpu.CompilerParams(
            dimension_semantics=("parallel", "parallel"),
            vmem_limit_bytes=_VMEM_LIMIT),
    )(x_p, g2, w_p)
    return out[:n, :m]


def pallas_norm_swiglu(x, gamma, w1, w3, *, eps, out_dtype):
    """SiLU(RMSNorm(x) @ w1) * (RMSNorm(x) @ w3) — grid (M, H)."""
    n, d = x.shape
    _, h = w1.shape
    tm, n_pad = _tile(n, _TM, 16)
    th, h_pad = _tile(h, _TN, 128)
    x_p = _pad_to(x, (n_pad, d))
    w1_p = _pad_to(w1, (d, h_pad))
    w3_p = _pad_to(w3, (d, h_pad))
    g2 = gamma.reshape(1, d)
    out = pl.pallas_call(
        functools.partial(_norm_swiglu_kernel, eps=eps),
        out_shape=jax.ShapeDtypeStruct((n_pad, h_pad), out_dtype),
        grid=(n_pad // tm, h_pad // th),
        in_specs=[
            pl.BlockSpec((tm, d), lambda i, j: (i, 0)),
            pl.BlockSpec((1, d), lambda i, j: (0, 0)),
            pl.BlockSpec((d, th), lambda i, j: (0, j)),
            pl.BlockSpec((d, th), lambda i, j: (0, j)),
        ],
        out_specs=pl.BlockSpec((tm, th), lambda i, j: (i, j)),
        compiler_params=pltpu.CompilerParams(
            dimension_semantics=("parallel", "parallel"),
            vmem_limit_bytes=_VMEM_LIMIT),
    )(x_p, g2, w1_p, w3_p)
    return out[:n, :h]


def pallas_matmul_residual(x, w, res, *, out_dtype):
    """res + x @ w — grid (M, N, K) with f32 accumulator scratch."""
    n, k = x.shape
    _, m = w.shape
    tm, n_pad = _tile(n, _TM, 16)
    tk, k_pad = _tile(k, _TK, 128)
    tn, m_pad = _tile(m, _TN, 128)
    x_p = _pad_to(x, (n_pad, k_pad))
    w_p = _pad_to(w, (k_pad, m_pad))
    r_p = _pad_to(res, (n_pad, m_pad))
    out = pl.pallas_call(
        _matmul_residual_kernel,
        out_shape=jax.ShapeDtypeStruct((n_pad, m_pad), out_dtype),
        grid=(n_pad // tm, m_pad // tn, k_pad // tk),
        in_specs=[
            pl.BlockSpec((tm, tk), lambda i, j, kk: (i, kk)),
            pl.BlockSpec((tk, tn), lambda i, j, kk: (kk, j)),
            pl.BlockSpec((tm, tn), lambda i, j, kk: (i, j)),
        ],
        out_specs=pl.BlockSpec((tm, tn), lambda i, j, kk: (i, j)),
        scratch_shapes=[pltpu.VMEM((tm, tn), jnp.float32)],
        compiler_params=pltpu.CompilerParams(
            dimension_semantics=("parallel", "parallel", "arbitrary"),
            vmem_limit_bytes=_VMEM_LIMIT),
    )(x_p, w_p, r_p)
    return out[:n, :m]


def pallas_flash_attention(q, k, v):
    """Causal flash attention. q: (B, nH, S, hd), k/v: (B, nKV, S, hd) (GQA)."""
    b, nh, s, hd = q.shape
    nkv = k.shape[1]
    n_rep = nh // nkv
    tkv = _TKV if (s > _TKV and s % _TKV == 0) else s

    q_spec = pl.BlockSpec((1, 1, s, hd), lambda bb, h, kb: (bb, h, 0, 0))
    if n_rep == 1:
        kv_index = lambda bb, h, kb: (bb, h, kb, 0)
    else:
        # GQA: query head h reads shared KV head h // n_rep (no jnp.repeat)
        kv_index = lambda bb, h, kb: (bb, h // n_rep, kb, 0)
    kv_spec = pl.BlockSpec((1, 1, tkv, hd), kv_index)

    return pl.pallas_call(
        functools.partial(_flash_attn_kernel, scale=1.0 / math.sqrt(hd)),
        out_shape=jax.ShapeDtypeStruct((b, nh, s, hd), q.dtype),
        grid=(b, nh, s // tkv),
        in_specs=[q_spec, kv_spec, kv_spec],
        out_specs=q_spec,
        scratch_shapes=[pltpu.VMEM((s, 1), jnp.float32),
                        pltpu.VMEM((s, 1), jnp.float32),
                        pltpu.VMEM((s, hd), jnp.float32)],
        compiler_params=pltpu.CompilerParams(
            dimension_semantics=("parallel", "parallel", "arbitrary"),
            vmem_limit_bytes=_VMEM_LIMIT),
    )(q, k, v)


# -----------------------------------------------------------------------------
# Model glue (plain JAX): RoPE tables, RoPE apply, layer wiring, params
# -----------------------------------------------------------------------------
def compute_fre_sin_and_cos(dim, max_seq_len, theta=10000.0):
    # Faithful to reference: POSITIVE exponent theta ** (i/dim).
    fre = (theta ** (jnp.arange(0, dim, 2).astype(jnp.float32) / dim)
           ).reshape(-1, dim // 2)
    token = jnp.arange(max_seq_len, dtype=jnp.float32).reshape(-1, 1)
    fre = fre * token
    return jnp.cos(fre), jnp.sin(fre)


def apply_rotary_embedding(xq, xk, fc, fs):
    b, s, hq, hd = xq.shape
    hk = xk.shape[2]
    xq_ = xq.reshape(b, s, hq, hd // 2, 2)
    xk_ = xk.reshape(b, s, hk, hd // 2, 2)
    xq_r, xq_i = xq_[..., 0], xq_[..., 1]
    xk_r, xk_i = xk_[..., 0], xk_[..., 1]
    fc = fc.reshape(1, s, 1, hd // 2)
    fs = fs.reshape(1, s, 1, hd // 2)
    xq_out = jnp.stack([xq_r * fc - xq_i * fs,
                        xq_r * fs + xq_i * fc], axis=-1).reshape(b, s, hq, hd)
    xk_out = jnp.stack([xk_r * fc - xk_i * fs,
                        xk_r * fs + xk_i * fc], axis=-1).reshape(b, s, hk, hd)
    return xq_out, xk_out


def decoder_layer(h, lp, fc, fs, cfg):
    b, s, d = h.shape
    nh, nkv, hd = cfg["n_heads"], cfg["n_kv_heads"], cfg["head_dim"]
    eps = cfg["norm_eps"]
    h2 = h.reshape(b * s, d)

    # --- attention block: fused RMSNorm + fused QKV projection ---
    qkv = pallas_norm_matmul(h2, lp["attn_norm_w"], lp["wqkv_T"],
                             eps=eps, out_dtype=jnp.bfloat16)
    q_dim, kv_dim = nh * hd, nkv * hd
    xq = qkv[:, :q_dim].reshape(b, s, nh, hd)
    xk = qkv[:, q_dim:q_dim + kv_dim].reshape(b, s, nkv, hd)
    xv = qkv[:, q_dim + kv_dim:].reshape(b, s, nkv, hd)

    # RoPE (tiny elementwise, f32) stays in JAX glue
    xq, xk = apply_rotary_embedding(xq.astype(jnp.float32),
                                    xk.astype(jnp.float32), fc, fs)

    q = xq.transpose(0, 2, 1, 3).astype(jnp.bfloat16)        # (b, nh, s, hd)
    k = xk.transpose(0, 2, 1, 3).astype(jnp.bfloat16)        # (b, nkv, s, hd)
    v = xv.transpose(0, 2, 1, 3)                             # (b, nkv, s, hd) bf16

    attn = pallas_flash_attention(q, k, v)                   # (b, nh, s, hd)
    attn = attn.transpose(0, 2, 1, 3).reshape(b * s, nh * hd)

    # output projection with fused residual add
    h2 = pallas_matmul_residual(attn, lp["wo_T"], h2, out_dtype=jnp.bfloat16)

    # --- feed-forward block: fused RMSNorm + SwiGLU up, down proj + residual ---
    g = pallas_norm_swiglu(h2, lp["ffn_norm_w"], lp["w1_T"], lp["w3_T"],
                           eps=eps, out_dtype=jnp.bfloat16)
    h2 = pallas_matmul_residual(g, lp["w2_T"], h2, out_dtype=jnp.bfloat16)
    return h2.reshape(b, s, d)


def transformer_forward(params, tokens, cfg):
    b, s = tokens.shape
    h = jnp.take(params["tok_emb"], tokens, axis=0)          # (B, S, D) bf16
    fc = params["freqs_cos"][:s]
    fs = params["freqs_sin"][:s]
    for lp in params["layers"]:
        h = decoder_layer(h, lp, fc, fs, cfg)
    # final RMSNorm fused with the (tied) vocab projection; last position only
    h_last = h[:, -1, :]                                     # (B, D)
    logits = pallas_norm_matmul(h_last, params["norm_w"], params["wout_T"],
                                eps=cfg["norm_eps"], out_dtype=jnp.float32,
                                tn_target=1024)              # lane-dense V tiles
    return logits[:, None, :]                                # (B, 1, V)


def init_params(key, cfg):
    d = cfg["dim"]
    nh, nkv, hd = cfg["n_heads"], cfg["n_kv_heads"], cfg["head_dim"]
    vocab = cfg["vocab_size"]
    hidden = cfg["hidden_dim"]
    if hidden is None:
        hidden = 4 * d
        hidden = int(2 * hidden / 3)
        m = cfg["multiple_of"]
        hidden = m * ((hidden + m - 1) // m)
    cfg["hidden_dim_resolved"] = hidden

    std = 0.02
    std_proj = 0.02 / math.sqrt(2 * cfg["n_layers"])         # wo / w3 special init

    def nrm(k, shape, s_):
        return s_ * jax.random.normal(k, shape, dtype=jnp.float32)

    keys = jax.random.split(key, 2 + 8 * cfg["n_layers"])
    ki = iter(keys)

    # output / embedding weight (tied): torch shape (V, D)
    w_out = nrm(next(ki), (vocab, d), std)
    params = {
        "tok_emb": w_out.astype(jnp.bfloat16),               # (V, D)
        "wout_T": w_out.T.astype(jnp.bfloat16),              # (D, V)
        "norm_w": jnp.ones((d,), jnp.float32),
        "layers": [],
    }
    fc, fs = compute_fre_sin_and_cos(hd, cfg["max_seq_len"])
    params["freqs_cos"], params["freqs_sin"] = fc, fs

    for _ in range(cfg["n_layers"]):
        wq = nrm(next(ki), (nh * hd, d), std)
        wk = nrm(next(ki), (nkv * hd, d), std)
        wv = nrm(next(ki), (nkv * hd, d), std)
        wo = nrm(next(ki), (d, nh * hd), std_proj)
        w1 = nrm(next(ki), (hidden, d), std)
        w2 = nrm(next(ki), (d, hidden), std)
        w3 = nrm(next(ki), (hidden, d), std_proj)
        _ = next(ki)                                         # stable key consumption
        lp = {
            # stored pre-transposed as (in, out) so kernels compute x @ W^T;
            # Q/K/V fused into one weight for a single projection pass
            "wqkv_T": jnp.concatenate([wq.T, wk.T, wv.T], axis=1).astype(jnp.bfloat16),
            "wo_T": wo.T.astype(jnp.bfloat16),
            "w1_T": w1.T.astype(jnp.bfloat16),
            "w2_T": w2.T.astype(jnp.bfloat16),
            "w3_T": w3.T.astype(jnp.bfloat16),
            "attn_norm_w": jnp.ones((d,), jnp.float32),
            "ffn_norm_w": jnp.ones((d,), jnp.float32),
        }
        params["layers"].append(lp)
    return params


# -----------------------------------------------------------------------------
if __name__ == "__main__":
    cfg = dict(
        dim=32,
        n_layers=2,
        n_heads=4,
        n_kv_heads=4,
        vocab_size=256,
        hidden_dim=None,
        multiple_of=32,
        norm_eps=1e-5,
        max_seq_len=16,
        dropout=0.0,
    )
    cfg["head_dim"] = cfg["dim"] // cfg["n_heads"]

    root = jax.random.PRNGKey(0)
    k_params, k_tok = jax.random.split(root)
    params = init_params(k_params, cfg)

    batch, seqlen = 2, 8
    tokens = jax.random.randint(k_tok, (batch, seqlen), 0, cfg["vocab_size"],
                                dtype=jnp.int32)

    fwd = jax.jit(functools.partial(transformer_forward, cfg=cfg))
    logits = fwd(params, tokens)
    logits = jax.block_until_ready(logits)

    assert logits.shape == (batch, 1, cfg["vocab_size"]), logits.shape
    assert jnp.all(jnp.isfinite(logits))
    print("KERNEL_OK")
</pallas_src>

<mosaic_0001>
module attributes {stable_mosaic.version = 11 : i64} {
  func.func @_norm_matmul_kernel(%arg0: i32, %arg1: i32, %arg2: memref<16x32xbf16, #tpu.memory_space<vmem>>, %arg3: memref<1x32xf32, #tpu.memory_space<vmem>>, %arg4: memref<32x128xbf16, #tpu.memory_space<vmem>>, %arg5: memref<16x128xbf16, #tpu.memory_space<vmem>>) attributes {dimension_semantics = [#tpu.dimension_semantics<parallel>, #tpu.dimension_semantics<parallel>], iteration_bounds = array<i64: 1, 1>, scalar_prefetch = 0 : i64, scratch_operands = 0 : i64, tpu.core_type = #tpu.core_type<tc>, window_params = [{transform_indices = @transform_0, window_bounds = array<i64: 16, 32>}, {pipeline_mode = #tpu.pipeline_mode<synchronous>, transform_indices = @transform_1, window_bounds = array<i64: 1, 32>}, {transform_indices = @transform_2, window_bounds = array<i64: 32, 128>}, {transform_indices = @transform_3, window_bounds = array<i64: 16, 128>}]} {
    %c0 = arith.constant 0 : index
    %c0_0 = arith.constant 0 : index
    %0 = vector.load %arg2[%c0, %c0_0] : memref<16x32xbf16, #tpu.memory_space<vmem>>, vector<16x32xbf16>
    %1 = arith.extf %0 : vector<16x32xbf16> to vector<16x32xf32>
    %2 = arith.mulf %1, %1 : vector<16x32xf32>
    %cst = arith.constant dense<0.000000e+00> : vector<16xf32>
    %3 = vector.multi_reduction <add>, %2, %cst [1] : vector<16x32xf32> to vector<16xf32>
    %4 = vector.shape_cast %3 : vector<16xf32> to vector<16x1xf32>
    %cst_1 = arith.constant 3.200000e+01 : f32
    %5 = vector.broadcast %cst_1 : f32 to vector<16x1xf32>
    %6 = arith.divf %4, %5 : vector<16x1xf32>
    %cst_2 = arith.constant 9.99999974E-6 : f32
    %7 = vector.broadcast %cst_2 : f32 to vector<16x1xf32>
    %8 = arith.addf %6, %7 : vector<16x1xf32>
    %9 = math.rsqrt %8 : vector<16x1xf32>
    %10 = vector.broadcast %9 : vector<16x1xf32> to vector<16x32xf32>
    %11 = arith.mulf %1, %10 : vector<16x32xf32>
    %c0_3 = arith.constant 0 : index
    %c0_4 = arith.constant 0 : index
    %12 = vector.load %arg3[%c0_3, %c0_4] : memref<1x32xf32, #tpu.memory_space<vmem>>, vector<1x32xf32>
    %13 = vector.broadcast %12 : vector<1x32xf32> to vector<16x32xf32>
    %14 = arith.mulf %11, %13 : vector<16x32xf32>
    %15 = arith.truncf %14 : vector<16x32xf32> to vector<16x32xbf16>
    %c0_5 = arith.constant 0 : index
    %c0_6 = arith.constant 0 : index
    %16 = vector.load %arg4[%c0_5, %c0_6] : memref<32x128xbf16, #tpu.memory_space<vmem>>, vector<32x128xbf16>
    %cst_7 = arith.constant dense<0.000000e+00> : vector<16x128xf32>
    %17 = tpu.matmul %15, %16, %cst_7 {dimension_numbers = #tpu.dot_dimension_numbers<[1], [0], [0], [1], [0, 0, 1, 1], [], []>} : vector<16x32xbf16>, vector<32x128xbf16>, vector<16x128xf32> -> vector<16x128xf32>
    %18 = arith.truncf %17 : vector<16x128xf32> to vector<16x128xbf16>
    %c0_8 = arith.constant 0 : index
    %c0_9 = arith.constant 0 : index
    %19 = vector.load %arg5[%c0_8, %c0_9] : memref<16x128xbf16, #tpu.memory_space<vmem>>, vector<16x128xbf16>
    tpu.vector_store %arg5[%c0_8, %c0_9], %18 {strides = array<i32>} : memref<16x128xbf16, #tpu.memory_space<vmem>>, vector<16x128xbf16>,
    return
  }
  func.func @transform_0(%arg0: i32, %arg1: i32) -> (i32, i32) {
    %c0_i32 = arith.constant 0 : i32
    %c0_i32_0 = arith.constant 0 : i32
    return %arg0, %c0_i32 : i32, i32
  }
  func.func @transform_1(%arg0: i32, %arg1: i32) -> (i32, i32) {
    %c0_i32 = arith.constant 0 : i32
    %c0_i32_0 = arith.constant 0 : i32
    %c0_i32_1 = arith.constant 0 : i32
    return %c0_i32, %c0_i32_0 : i32, i32
  }
  func.func @transform_2(%arg0: i32, %arg1: i32) -> (i32, i32) {
    %c0_i32 = arith.constant 0 : i32
    %c0_i32_0 = arith.constant 0 : i32
    return %c0_i32, %arg1 : i32, i32
  }
  func.func @transform_3(%arg0: i32, %arg1: i32) -> (i32, i32) {
    %c0_i32 = arith.constant 0 : i32
    return %arg0, %arg1 : i32, i32
  }
}

module attributes {stable_mosaic.version = 11 : i64} {
  func.func @_flash_attn_kernel(%arg0: i32, %arg1: i32, %arg2: i32, %arg3: memref<1x1x8x8xbf16, #tpu.memory_space<vmem>>, %arg4: memref<1x1x8x8xbf16, #tpu.memory_space<vmem>>, %arg5: memref<1x1x8x8xbf16, #tpu.memory_space<vmem>>, %arg6: memref<1x1x8x8xbf16, #tpu.memory_space<vmem>>, %arg7: memref<8x1xf32, #tpu.memory_space<vmem>>, %arg8: memref<8x1xf32, #tpu.memory_space<vmem>>, %arg9: memref<8x8xf32, #tpu.memory_space<vmem>>) attributes {dimension_semantics = [#tpu.dimension_semantics<parallel>, #tpu.dimension_semantics<parallel>, #tpu.dimension_semantics<arbitrary>], iteration_bounds = array<i64: 2, 4, 1>, scalar_prefetch = 0 : i64, scratch_operands = 3 : i64, tpu.core_type = #tpu.core_type<tc>, window_params = [{transform_indices = @transform_0, window_bounds = array<i64: 1, 1, 8, 8>}, {transform_indices = @transform_1, window_bounds = array<i64: 1, 1, 8, 8>}, {transform_indices = @transform_2, window_bounds = array<i64: 1, 1, 8, 8>}, {transform_indices = @transform_3, window_bounds = array<i64: 1, 1, 8, 8>}]} {
    %c0_i32 = arith.constant 0 : i32
    %0 = arith.cmpi eq, %arg2, %c0_i32 : i32
    %1 = arith.extui %0 : i1 to i32
    %c0_i32_0 = arith.constant 0 : i32
    %2 = arith.cmpi ne, %1, %c0_i32_0 : i32
    scf.if %2 {
      %cst_31 = arith.constant -1.000000e+30 : f32
      %46 = vector.broadcast %cst_31 : f32 to vector<8x1xf32>
      %c0_32 = arith.constant 0 : index
      %c0_33 = arith.constant 0 : index
      %47 = vector.load %arg7[%c0_32, %c0_33] : memref<8x1xf32, #tpu.memory_space<vmem>>, vector<8x1xf32>
      tpu.vector_store %arg7[%c0_32, %c0_33], %46 {strides = array<i32>} : memref<8x1xf32, #tpu.memory_space<vmem>>, vector<8x1xf32>,
      %cst_34 = arith.constant 0.000000e+00 : f32
      %48 = vector.broadcast %cst_34 : f32 to vector<8x1xf32>
      %c0_35 = arith.constant 0 : index
      %c0_36 = arith.constant 0 : index
      %49 = vector.load %arg8[%c0_35, %c0_36] : memref<8x1xf32, #tpu.memory_space<vmem>>, vector<8x1xf32>
      tpu.vector_store %arg8[%c0_35, %c0_36], %48 {strides = array<i32>} : memref<8x1xf32, #tpu.memory_space<vmem>>, vector<8x1xf32>,
      %cst_37 = arith.constant 0.000000e+00 : f32
      %50 = vector.broadcast %cst_37 : f32 to vector<8x8xf32>
      %c0_38 = arith.constant 0 : index
      %c0_39 = arith.constant 0 : index
      %51 = vector.load %arg9[%c0_38, %c0_39] : memref<8x8xf32, #tpu.memory_space<vmem>>, vector<8x8xf32>
      tpu.vector_store %arg9[%c0_38, %c0_39], %50 {strides = array<i32>} : memref<8x8xf32, #tpu.memory_space<vmem>>, vector<8x8xf32>,
    } else {
    }
    %c0 = arith.constant 0 : index
    %c0_1 = arith.constant 0 : index
    %c0_2 = arith.constant 0 : index
    %c0_3 = arith.constant 0 : index
    %3 = vector.load %arg3[%c0, %c0_1, %c0_2, %c0_3] : memref<1x1x8x8xbf16, #tpu.memory_space<vmem>>, vector<1x1x8x8xbf16>
    %4 = vector.shape_cast %3 : vector<1x1x8x8xbf16> to vector<8x8xbf16>
    %c0_4 = arith.constant 0 : index
    %c0_5 = arith.constant 0 : index
    %c0_6 = arith.constant 0 : index
    %c0_7 = arith.constant 0 : index
    %5 = vector.load %arg4[%c0_4, %c0_5, %c0_6, %c0_7] : memref<1x1x8x8xbf16, #tpu.memory_space<vmem>>, vector<1x1x8x8xbf16>
    %6 = vector.shape_cast %5 : vector<1x1x8x8xbf16> to vector<8x8xbf16>
    %c0_8 = arith.constant 0 : index
    %c0_9 = arith.constant 0 : index
    %c0_10 = arith.constant 0 : index
    %c0_11 = arith.constant 0 : index
    %7 = vector.load %arg5[%c0_8, %c0_9, %c0_10, %c0_11] : memref<1x1x8x8xbf16, #tpu.memory_space<vmem>>, vector<1x1x8x8xbf16>
    %8 = vector.shape_cast %7 : vector<1x1x8x8xbf16> to vector<8x8xbf16>
    %cst = arith.constant dense<0.000000e+00> : vector<8x8xf32>
    %9 = tpu.matmul %4, %6, %cst {dimension_numbers = #tpu.dot_dimension_numbers<[1], [1], [0], [0], [0, 0, 1, 0], [], []>} : vector<8x8xbf16>, vector<8x8xbf16>, vector<8x8xf32> -> vector<8x8xf32>
    %cst_12 = arith.constant 0.353553385 : f32
    %10 = vector.broadcast %cst_12 : f32 to vector<8x8xf32>
    %11 = arith.mulf %9, %10 : vector<8x8xf32>
    %12 = tpu.iota {dimensions = array<i32: 0>} : vector<8x8xi32>
    %13 = tpu.iota {dimensions = array<i32: 1>} : vector<8x8xi32>
    %c8_i32 = arith.constant 8 : i32
    %14 = arith.muli %arg2, %c8_i32 : i32
    %15 = vector.broadcast %14 : i32 to vector<8x8xi32>
    %16 = arith.addi %13, %15 : vector<8x8xi32>
    %17 = arith.cmpi sle, %16, %12 : vector<8x8xi32>
    %cst_13 = arith.constant -1.000000e+30 : f32
    %18 = vector.broadcast %cst_13 : f32 to vector<8x8xf32>
    %19 = arith.select %17, %11, %18 : vector<8x8xi1>, vector<8x8xf32>
    %c0_14 = arith.constant 0 : index
    %c0_15 = arith.constant 0 : index
    %20 = vector.load %arg7[%c0_14, %c0_15] : memref<8x1xf32, #tpu.memory_space<vmem>>, vector<8x1xf32>
    %cst_16 = arith.constant dense<0xFF800000> : vector<8xf32>
    %21 = vector.multi_reduction <maximumf>, %19, %cst_16 [1] : vector<8x8xf32> to vector<8xf32>
    %22 = vector.shape_cast %21 : vector<8xf32> to vector<8x1xf32>
    %23 = arith.maximumf %20, %22 : vector<8x1xf32>
    %24 = arith.subf %20, %23 : vector<8x1xf32>
    %25 = math.exp %24 : vector<8x1xf32>
    %26 = vector.broadcast %23 : vector<8x1xf32> to vector<8x8xf32>
    %27 = arith.subf %19, %26 : vector<8x8xf32>
    %28 = math.exp %27 : vector<8x8xf32>
    %c0_17 = arith.constant 0 : index
    %c0_18 = arith.constant 0 : index
    %29 = vector.load %arg8[%c0_17, %c0_18] : memref<8x1xf32, #tpu.memory_space<vmem>>, vector<8x1xf32>
    %30 = arith.mulf %25, %29 : vector<8x1xf32>
    %cst_19 = arith.constant dense<0.000000e+00> : vector<8xf32>
    %31 = vector.multi_reduction <add>, %28, %cst_19 [1] : vector<8x8xf32> to vector<8xf32>
    %32 = vector.shape_cast %31 : vector<8xf32> to vector<8x1xf32>
    %33 = arith.addf %30, %32 : vector<8x1xf32>
    %c0_20 = arith.constant 0 : index
    %c0_21 = arith.constant 0 : index
    %34 = vector.load %arg8[%c0_20, %c0_21] : memref<8x1xf32, #tpu.memory_space<vmem>>, vector<8x1xf32>
    tpu.vector_store %arg8[%c0_20, %c0_21], %33 {strides = array<i32>} : memref<8x1xf32, #tpu.memory_space<vmem>>, vector<8x1xf32>,
    %c0_22 = arith.constant 0 : index
    %c0_23 = arith.constant 0 : index
    %35 = vector.load %arg9[%c0_22, %c0_23] : memref<8x8xf32, #tpu.memory_space<vmem>>, vector<8x8xf32>
    %36 = vector.broadcast %25 : vector<8x1xf32> to vector<8x8xf32>
    %37 = arith.mulf %36, %35 : vector<8x8xf32>
    %38 = arith.truncf %28 : vector<8x8xf32> to vector<8x8xbf16>
    %cst_24 = arith.constant dense<0.000000e+00> : vector<8x8xf32>
    %39 = tpu.matmul %38, %8, %cst_24 {dimension_numbers = #tpu.dot_dimension_numbers<[1], [0], [0], [1], [0, 0, 1, 1], [], []>} : vector<8x8xbf16>, vector<8x8xbf16>, vector<8x8xf32> -> vector<8x8xf32>
    %40 = arith.addf %37, %39 : vector<8x8xf32>
    %c0_25 = arith.constant 0 : index
    %c0_26 = arith.constant 0 : index
    %41 = vector.load %arg9[%c0_25, %c0_26] : memref<8x8xf32, #tpu.memory_space<vmem>>, vector<8x8xf32>
    tpu.vector_store %arg9[%c0_25, %c0_26], %40 {strides = array<i32>} : memref<8x8xf32, #tpu.memory_space<vmem>>, vector<8x8xf32>,
    %c0_27 = arith.constant 0 : index
    %c0_28 = arith.constant 0 : index
    %42 = vector.load %arg7[%c0_27, %c0_28] : memref<8x1xf32, #tpu.memory_space<vmem>>, vector<8x1xf32>
    tpu.vector_store %arg7[%c0_27, %c0_28], %23 {strides = array<i32>} : memref<8x1xf32, #tpu.memory_space<vmem>>, vector<8x1xf32>,
    %c0_i32_29 = arith.constant 0 : i32
    %43 = arith.cmpi eq, %arg2, %c0_i32_29 : i32
    %44 = arith.extui %43 : i1 to i32
    %c0_i32_30 = arith.constant 0 : i32
    %45 = arith.cmpi ne, %44, %c0_i32_30 : i32
    scf.if %45 {
      %c0_31 = arith.constant 0 : index
      %c0_32 = arith.constant 0 : index
      %46 = vector.load %arg9[%c0_31, %c0_32] : memref<8x8xf32, #tpu.memory_space<vmem>>, vector<8x8xf32>
      %c0_33 = arith.constant 0 : index
      %c0_34 = arith.constant 0 : index
      %47 = vector.load %arg8[%c0_33, %c0_34] : memref<8x1xf32, #tpu.memory_space<vmem>>, vector<8x1xf32>
      %48 = tpu.reciprocal %47 {approx = true} : vector<8x1xf32> -> vector<8x1xf32>
      %49 = vector.broadcast %48 : vector<8x1xf32> to vector<8x8xf32>
      %50 = arith.mulf %46, %49 : vector<8x8xf32>
      %51 = arith.truncf %50 : vector<8x8xf32> to vector<8x8xbf16>
      %c0_35 = arith.constant 0 : index
      %c0_36 = arith.constant 0 : index
      %c0_37 = arith.constant 0 : index
      %c0_38 = arith.constant 0 : index
      %52 = vector.load %arg6[%c0_35, %c0_36, %c0_37, %c0_38] : memref<1x1x8x8xbf16, #tpu.memory_space<vmem>>, vector<1x1x8x8xbf16>
      %53 = vector.shape_cast %52 : vector<1x1x8x8xbf16> to vector<8x8xbf16>
      %54 = vector.shape_cast %51 : vector<8x8xbf16> to vector<1x1x8x8xbf16>
      tpu.vector_store %arg6[%c0_35, %c0_36, %c0_37, %c0_38], %54 {strides = array<i32>} : memref<1x1x8x8xbf16, #tpu.memory_space<vmem>>, vector<1x1x8x8xbf16>,
    } else {
    }
    return
  }
  func.func @transform_0(%arg0: i32, %arg1: i32, %arg2: i32) -> (i32, i32, i32, i32) {
    %c0_i32 = arith.constant 0 : i32
    %c0_i32_0 = arith.constant 0 : i32
    %c0_i32_1 = arith.constant 0 : i32
    return %arg0, %arg1, %c0_i32, %c0_i32_0 : i32, i32, i32, i32
  }
  func.func @transform_1(%arg0: i32, %arg1: i32, %arg2: i32) -> (i32, i32, i32, i32) {
    %c0_i32 = arith.constant 0 : i32
    %c0_i32_0 = arith.constant 0 : i32
    return %arg0, %arg1, %arg2, %c0_i32 : i32, i32, i32, i32
  }
  func.func @transform_2(%arg0: i32, %arg1: i32, %arg2: i32) -> (i32, i32, i32, i32) {
    %c0_i32 = arith.constant 0 : i32
    %c0_i32_0 = arith.constant 0 : i32
    return %arg0, %arg1, %arg2, %c0_i32 : i32, i32, i32, i32
  }
  func.func @transform_3(%arg0: i32, %arg1: i32, %arg2: i32) -> (i32, i32, i32, i32) {
    %c0_i32 = arith.constant 0 : i32
    %c0_i32_0 = arith.constant 0 : i32
    %c0_i32_1 = arith.constant 0 : i32
    return %arg0, %arg1, %c0_i32, %c0_i32_0 : i32, i32, i32, i32
  }
}

module attributes {stable_mosaic.version = 11 : i64} {
  func.func @_matmul_residual_kernel(%arg0: i32, %arg1: i32, %arg2: i32, %arg3: memref<16x128xbf16, #tpu.memory_space<vmem>>, %arg4: memref<128x128xbf16, #tpu.memory_space<vmem>>, %arg5: memref<16x128xbf16, #tpu.memory_space<vmem>>, %arg6: memref<16x128xbf16, #tpu.memory_space<vmem>>, %arg7: memref<16x128xf32, #tpu.memory_space<vmem>>) attributes {dimension_semantics = [#tpu.dimension_semantics<parallel>, #tpu.dimension_semantics<parallel>, #tpu.dimension_semantics<arbitrary>], iteration_bounds = array<i64: 1, 1, 1>, scalar_prefetch = 0 : i64, scratch_operands = 1 : i64, tpu.core_type = #tpu.core_type<tc>, window_params = [{transform_indices = @transform_0, window_bounds = array<i64: 16, 128>}, {transform_indices = @transform_1, window_bounds = array<i64: 128, 128>}, {transform_indices = @transform_2, window_bounds = array<i64: 16, 128>}, {transform_indices = @transform_3, window_bounds = array<i64: 16, 128>}]} {
    %c0_i32 = arith.constant 0 : i32
    %0 = arith.cmpi eq, %arg2, %c0_i32 : i32
    %1 = arith.extui %0 : i1 to i32
    %c0_i32_0 = arith.constant 0 : i32
    %2 = arith.cmpi ne, %1, %c0_i32_0 : i32
    scf.if %2 {
      %cst_10 = arith.constant 0.000000e+00 : f32
      %12 = vector.broadcast %cst_10 : f32 to vector<16x128xf32>
      %c0_11 = arith.constant 0 : index
      %c0_12 = arith.constant 0 : index
      %13 = vector.load %arg7[%c0_11, %c0_12] : memref<16x128xf32, #tpu.memory_space<vmem>>, vector<16x128xf32>
      tpu.vector_store %arg7[%c0_11, %c0_12], %12 {strides = array<i32>} : memref<16x128xf32, #tpu.memory_space<vmem>>, vector<16x128xf32>,
    } else {
    }
    %c0 = arith.constant 0 : index
    %c0_1 = arith.constant 0 : index
    %3 = vector.load %arg7[%c0, %c0_1] : memref<16x128xf32, #tpu.memory_space<vmem>>, vector<16x128xf32>
    %c0_2 = arith.constant 0 : index
    %c0_3 = arith.constant 0 : index
    %4 = vector.load %arg3[%c0_2, %c0_3] : memref<16x128xbf16, #tpu.memory_space<vmem>>, vector<16x128xbf16>
    %c0_4 = arith.constant 0 : index
    %c0_5 = arith.constant 0 : index
    %5 = vector.load %arg4[%c0_4, %c0_5] : memref<128x128xbf16, #tpu.memory_space<vmem>>, vector<128x128xbf16>
    %cst = arith.constant dense<0.000000e+00> : vector<16x128xf32>
    %6 = tpu.matmul %4, %5, %cst {dimension_numbers = #tpu.dot_dimension_numbers<[1], [0], [0], [1], [0, 0, 1, 1], [], []>} : vector<16x128xbf16>, vector<128x128xbf16>, vector<16x128xf32> -> vector<16x128xf32>
    %7 = arith.addf %3, %6 : vector<16x128xf32>
    %c0_6 = arith.constant 0 : index
    %c0_7 = arith.constant 0 : index
    %8 = vector.load %arg7[%c0_6, %c0_7] : memref<16x128xf32, #tpu.memory_space<vmem>>, vector<16x128xf32>
    tpu.vector_store %arg7[%c0_6, %c0_7], %7 {strides = array<i32>} : memref<16x128xf32, #tpu.memory_space<vmem>>, vector<16x128xf32>,
    %c0_i32_8 = arith.constant 0 : i32
    %9 = arith.cmpi eq, %arg2, %c0_i32_8 : i32
    %10 = arith.extui %9 : i1 to i32
    %c0_i32_9 = arith.constant 0 : i32
    %11 = arith.cmpi ne, %10, %c0_i32_9 : i32
    scf.if %11 {
      %c0_10 = arith.constant 0 : index
      %c0_11 = arith.constant 0 : index
      %12 = vector.load %arg7[%c0_10, %c0_11] : memref<16x128xf32, #tpu.memory_space<vmem>>, vector<16x128xf32>
      %c0_12 = arith.constant 0 : index
      %c0_13 = arith.constant 0 : index
      %13 = vector.load %arg5[%c0_12, %c0_13] : memref<16x128xbf16, #tpu.memory_space<vmem>>, vector<16x128xbf16>
      %14 = arith.extf %13 : vector<16x128xbf16> to vector<16x128xf32>
      %15 = arith.addf %12, %14 : vector<16x128xf32>
      %16 = arith.truncf %15 : vector<16x128xf32> to vector<16x128xbf16>
      %c0_14 = arith.constant 0 : index
      %c0_15 = arith.constant 0 : index
      %17 = vector.load %arg6[%c0_14, %c0_15] : memref<16x128xbf16, #tpu.memory_space<vmem>>, vector<16x128xbf16>
      tpu.vector_store %arg6[%c0_14, %c0_15], %16 {strides = array<i32>} : memref<16x128xbf16, #tpu.memory_space<vmem>>, vector<16x128xbf16>,
    } else {
    }
    return
  }
  func.func @transform_0(%arg0: i32, %arg1: i32, %arg2: i32) -> (i32, i32) {
    %c0_i32 = arith.constant 0 : i32
    return %arg0, %arg2 : i32, i32
  }
  func.func @transform_1(%arg0: i32, %arg1: i32, %arg2: i32) -> (i32, i32) {
    %c0_i32 = arith.constant 0 : i32
    return %arg2, %arg1 : i32, i32
  }
  func.func @transform_2(%arg0: i32, %arg1: i32, %arg2: i32) -> (i32, i32) {
    %c0_i32 = arith.constant 0 : i32
    return %arg0, %arg1 : i32, i32
  }
  func.func @transform_3(%arg0: i32, %arg1: i32, %arg2: i32) -> (i32, i32) {
    %c0_i32 = arith.constant 0 : i32
    return %arg0, %arg1 : i32, i32
  }
}

module attributes {stable_mosaic.version = 11 : i64} {
  func.func @_norm_swiglu_kernel(%arg0: i32, %arg1: i32, %arg2: memref<16x32xbf16, #tpu.memory_space<vmem>>, %arg3: memref<1x32xf32, #tpu.memory_space<vmem>>, %arg4: memref<32x128xbf16, #tpu.memory_space<vmem>>, %arg5: memref<32x128xbf16, #tpu.memory_space<vmem>>, %arg6: memref<16x128xbf16, #tpu.memory_space<vmem>>) attributes {dimension_semantics = [#tpu.dimension_semantics<parallel>, #tpu.dimension_semantics<parallel>], iteration_bounds = array<i64: 1, 1>, scalar_prefetch = 0 : i64, scratch_operands = 0 : i64, tpu.core_type = #tpu.core_type<tc>, window_params = [{transform_indices = @transform_0, window_bounds = array<i64: 16, 32>}, {pipeline_mode = #tpu.pipeline_mode<synchronous>, transform_indices = @transform_1, window_bounds = array<i64: 1, 32>}, {transform_indices = @transform_2, window_bounds = array<i64: 32, 128>}, {transform_indices = @transform_3, window_bounds = array<i64: 32, 128>}, {transform_indices = @transform_4, window_bounds = array<i64: 16, 128>}]} {
    %c0 = arith.constant 0 : index
    %c0_0 = arith.constant 0 : index
    %0 = vector.load %arg2[%c0, %c0_0] : memref<16x32xbf16, #tpu.memory_space<vmem>>, vector<16x32xbf16>
    %1 = arith.extf %0 : vector<16x32xbf16> to vector<16x32xf32>
    %2 = arith.mulf %1, %1 : vector<16x32xf32>
    %cst = arith.constant dense<0.000000e+00> : vector<16xf32>
    %3 = vector.multi_reduction <add>, %2, %cst [1] : vector<16x32xf32> to vector<16xf32>
    %4 = vector.shape_cast %3 : vector<16xf32> to vector<16x1xf32>
    %cst_1 = arith.constant 3.200000e+01 : f32
    %5 = vector.broadcast %cst_1 : f32 to vector<16x1xf32>
    %6 = arith.divf %4, %5 : vector<16x1xf32>
    %cst_2 = arith.constant 9.99999974E-6 : f32
    %7 = vector.broadcast %cst_2 : f32 to vector<16x1xf32>
    %8 = arith.addf %6, %7 : vector<16x1xf32>
    %9 = math.rsqrt %8 : vector<16x1xf32>
    %10 = vector.broadcast %9 : vector<16x1xf32> to vector<16x32xf32>
    %11 = arith.mulf %1, %10 : vector<16x32xf32>
    %c0_3 = arith.constant 0 : index
    %c0_4 = arith.constant 0 : index
    %12 = vector.load %arg3[%c0_3, %c0_4] : memref<1x32xf32, #tpu.memory_space<vmem>>, vector<1x32xf32>
    %13 = vector.broadcast %12 : vector<1x32xf32> to vector<16x32xf32>
    %14 = arith.mulf %11, %13 : vector<16x32xf32>
    %15 = arith.truncf %14 : vector<16x32xf32> to vector<16x32xbf16>
    %c0_5 = arith.constant 0 : index
    %c0_6 = arith.constant 0 : index
    %16 = vector.load %arg4[%c0_5, %c0_6] : memref<32x128xbf16, #tpu.memory_space<vmem>>, vector<32x128xbf16>
    %cst_7 = arith.constant dense<0.000000e+00> : vector<16x128xf32>
    %17 = tpu.matmul %15, %16, %cst_7 {dimension_numbers = #tpu.dot_dimension_numbers<[1], [0], [0], [1], [0, 0, 1, 1], [], []>} : vector<16x32xbf16>, vector<32x128xbf16>, vector<16x128xf32> -> vector<16x128xf32>
    %c0_8 = arith.constant 0 : index
    %c0_9 = arith.constant 0 : index
    %18 = vector.load %arg5[%c0_8, %c0_9] : memref<32x128xbf16, #tpu.memory_space<vmem>>, vector<32x128xbf16>
    %cst_10 = arith.constant dense<0.000000e+00> : vector<16x128xf32>
    %19 = tpu.matmul %15, %18, %cst_10 {dimension_numbers = #tpu.dot_dimension_numbers<[1], [0], [0], [1], [0, 0, 1, 1], [], []>} : vector<16x32xbf16>, vector<32x128xbf16>, vector<16x128xf32> -> vector<16x128xf32>
    %20 = arith.negf %17 : vector<16x128xf32>
    %21 = math.exp %20 : vector<16x128xf32>
    %cst_11 = arith.constant 1.000000e+00 : f32
    %22 = vector.broadcast %cst_11 : f32 to vector<16x128xf32>
    %23 = arith.addf %22, %21 : vector<16x128xf32>
    %24 = arith.divf %22, %23 : vector<16x128xf32>
    %25 = arith.mulf %17, %24 : vector<16x128xf32>
    %26 = arith.mulf %25, %19 : vector<16x128xf32>
    %27 = arith.truncf %26 : vector<16x128xf32> to vector<16x128xbf16>
    %c0_12 = arith.constant 0 : index
    %c0_13 = arith.constant 0 : index
    %28 = vector.load %arg6[%c0_12, %c0_13] : memref<16x128xbf16, #tpu.memory_space<vmem>>, vector<16x128xbf16>
    tpu.vector_store %arg6[%c0_12, %c0_13], %27 {strides = array<i32>} : memref<16x128xbf16, #tpu.memory_space<vmem>>, vector<16x128xbf16>,
    return
  }
  func.func @transform_0(%arg0: i32, %arg1: i32) -> (i32, i32) {
    %c0_i32 = arith.constant 0 : i32
    %c0_i32_0 = arith.constant 0 : i32
    return %arg0, %c0_i32 : i32, i32
  }
  func.func @transform_1(%arg0: i32, %arg1: i32) -> (i32, i32) {
    %c0_i32 = arith.constant 0 : i32
    %c0_i32_0 = arith.constant 0 : i32
    %c0_i32_1 = arith.constant 0 : i32
    return %c0_i32, %c0_i32_0 : i32, i32
  }
  func.func @transform_2(%arg0: i32, %arg1: i32) -> (i32, i32) {
    %c0_i32 = arith.constant 0 : i32
    %c0_i32_0 = arith.constant 0 : i32
    return %c0_i32, %arg1 : i32, i32
  }
  func.func @transform_3(%arg0: i32, %arg1: i32) -> (i32, i32) {
    %c0_i32 = arith.constant 0 : i32
    %c0_i32_0 = arith.constant 0 : i32
    return %c0_i32, %arg1 : i32, i32
  }
  func.func @transform_4(%arg0: i32, %arg1: i32) -> (i32, i32) {
    %c0_i32 = arith.constant 0 : i32
    return %arg0, %arg1 : i32, i32
  }
}

module attributes {stable_mosaic.version = 11 : i64} {
  func.func @_norm_matmul_kernel(%arg0: i32, %arg1: i32, %arg2: memref<16x32xbf16, #tpu.memory_space<vmem>>, %arg3: memref<1x32xf32, #tpu.memory_space<vmem>>, %arg4: memref<32x256xbf16, #tpu.memory_space<vmem>>, %arg5: memref<16x256xf32, #tpu.memory_space<vmem>>) attributes {dimension_semantics = [#tpu.dimension_semantics<parallel>, #tpu.dimension_semantics<parallel>], iteration_bounds = array<i64: 1, 1>, scalar_prefetch = 0 : i64, scratch_operands = 0 : i64, tpu.core_type = #tpu.core_type<tc>, window_params = [{transform_indices = @transform_0, window_bounds = array<i64: 16, 32>}, {pipeline_mode = #tpu.pipeline_mode<synchronous>, transform_indices = @transform_1, window_bounds = array<i64: 1, 32>}, {transform_indices = @transform_2, window_bounds = array<i64: 32, 256>}, {transform_indices = @transform_3, window_bounds = array<i64: 16, 256>}]} {
    %c0 = arith.constant 0 : index
    %c0_0 = arith.constant 0 : index
    %0 = vector.load %arg2[%c0, %c0_0] : memref<16x32xbf16, #tpu.memory_space<vmem>>, vector<16x32xbf16>
    %1 = arith.extf %0 : vector<16x32xbf16> to vector<16x32xf32>
    %2 = arith.mulf %1, %1 : vector<16x32xf32>
    %cst = arith.constant dense<0.000000e+00> : vector<16xf32>
    %3 = vector.multi_reduction <add>, %2, %cst [1] : vector<16x32xf32> to vector<16xf32>
    %4 = vector.shape_cast %3 : vector<16xf32> to vector<16x1xf32>
    %cst_1 = arith.constant 3.200000e+01 : f32
    %5 = vector.broadcast %cst_1 : f32 to vector<16x1xf32>
    %6 = arith.divf %4, %5 : vector<16x1xf32>
    %cst_2 = arith.constant 9.99999974E-6 : f32
    %7 = vector.broadcast %cst_2 : f32 to vector<16x1xf32>
    %8 = arith.addf %6, %7 : vector<16x1xf32>
    %9 = math.rsqrt %8 : vector<16x1xf32>
    %10 = vector.broadcast %9 : vector<16x1xf32> to vector<16x32xf32>
    %11 = arith.mulf %1, %10 : vector<16x32xf32>
    %c0_3 = arith.constant 0 : index
    %c0_4 = arith.constant 0 : index
    %12 = vector.load %arg3[%c0_3, %c0_4] : memref<1x32xf32, #tpu.memory_space<vmem>>, vector<1x32xf32>
    %13 = vector.broadcast %12 : vector<1x32xf32> to vector<16x32xf32>
    %14 = arith.mulf %11, %13 : vector<16x32xf32>
    %15 = arith.truncf %14 : vector<16x32xf32> to vector<16x32xbf16>
    %c0_5 = arith.constant 0 : index
    %c0_6 = arith.constant 0 : index
    %16 = vector.load %arg4[%c0_5, %c0_6] : memref<32x256xbf16, #tpu.memory_space<vmem>>, vector<32x256xbf16>
    %cst_7 = arith.constant dense<0.000000e+00> : vector<16x256xf32>
    %17 = tpu.matmul %15, %16, %cst_7 {dimension_numbers = #tpu.dot_dimension_numbers<[1], [0], [0], [1], [0, 0, 1, 1], [], []>} : vector<16x32xbf16>, vector<32x256xbf16>, vector<16x256xf32> -> vector<16x256xf32>
    %c0_8 = arith.constant 0 : index
    %c0_9 = arith.constant 0 : index
    %18 = vector.load %arg5[%c0_8, %c0_9] : memref<16x256xf32, #tpu.memory_space<vmem>>, vector<16x256xf32>
    tpu.vector_store %arg5[%c0_8, %c0_9], %17 {strides = array<i32>} : memref<16x256xf32, #tpu.memory_space<vmem>>, vector<16x256xf32>,
    return
  }
  func.func @transform_0(%arg0: i32, %arg1: i32) -> (i32, i32) {
    %c0_i32 = arith.constant 0 : i32
    %c0_i32_0 = arith.constant 0 : i32
    return %arg0, %c0_i32 : i32, i32
  }
  func.func @transform_1(%arg0: i32, %arg1: i32) -> (i32, i32) {
    %c0_i32 = arith.constant 0 : i32
    %c0_i32_0 = arith.constant 0 : i32
    %c0_i32_1 = arith.constant 0 : i32
    return %c0_i32, %c0_i32_0 : i32, i32
  }
  func.func @transform_2(%arg0: i32, %arg1: i32) -> (i32, i32) {
    %c0_i32 = arith.constant 0 : i32
    %c0_i32_0 = arith.constant 0 : i32
    return %c0_i32, %arg1 : i32, i32
  }
  func.func @transform_3(%arg0: i32, %arg1: i32) -> (i32, i32) {
    %c0_i32 = arith.constant 0 : i32
    return %arg0, %arg1 : i32, i32
  }
}

</mosaic_0001>

<llo_original>
// kernel: transformer_forward.11
$region0: #{transformer_forward.11}
  #allocation0 [shape = 'u32[]', space=smem, size = 0x4, offset = 0x4, fixed_abs, tag = 'smem constant byte address 0x4 - core index']
  #allocation1 [shape = 'u32[72,128]{1,0:T(1,128)}', space=vmem, size = 0x9000, scoped, tag = 'internal scratch']
  %s0 = inlined_call_operand.vmem [shape: bf16[16,32], index: 0, kind: input, shape index: {}]
  %s1 = inlined_call_operand.vmem [shape: f32[1,32], index: 1, kind: input, shape index: {}]
  %s2 = inlined_call_operand.vmem [shape: bf16[32,128], index: 2, kind: input, shape index: {}]
  %s3 = inlined_call_operand.vmem [shape: bf16[16,128], index: 3, kind: output, shape index: {}]
  %s4 = sld [smem:[#allocation0]]
  $region22: #{transformer_forward.11} parent=0
    _
  %s6 = ssub.s32 1, %s4
  %s7 = scalar_select 0, %s6, %s4
  // Predicated region
  $region2: #{transformer_forward.11} parent=0 // pred_check
    _
  $region3: #{transformer_forward.11} parent=0 // pred_check_branch
    %9 = sbr.rel (0) target = $region5
  $region4: #{transformer_forward.11} parent=0 // pred_region
    _
  $region5: #{transformer_forward.11} parent=0 // pred_fallthru
    _
  // Predicated region
  $region6: #{transformer_forward.11} parent=0 // pred_check
    _
  $region7: #{transformer_forward.11} parent=0 // pred_check_branch
    %11 = sbr.rel (0) target = $region9
  $region8: #{transformer_forward.11} parent=0 // pred_region
    _
  $region9: #{transformer_forward.11} parent=0 // pred_fallthru
    _
  // Predicated region
  $region10: #{transformer_forward.11} parent=0 // pred_check
    _
  $region11: #{transformer_forward.11} parent=0 // pred_check_branch
    %13 = sbr.rel (0) target = $region13
  $region12: #{transformer_forward.11} parent=0 // pred_region
    _
  $region13: #{transformer_forward.11} parent=0 // pred_fallthru
    _
  %v15 = vld [vmem:[%s0] sm:$0xf]
  %v16 = vld [vmem:[%s0 + $0x4] sm:$0xf]
  %v17 = vunpack.c.l.bf16 %v15
  %v18 = vunpack.c.l.bf16 %v16
  %v19 = vmul.f32 %v17, %v17
  %v20 = vmul.f32 %v18, %v18
  %vm21 = vcmask 261120
  %v22 = vsel %vm21, %v19, 0.0
  %23 = vadd.xlane.f32.xlu0 %v22
  %v24 = vpop.xlane.xlu0 %23
  %v25 = vsel %vm21, %v20, 0.0
  %26 = vadd.xlane.f32.xlu0 %v25
  %v27 = vpop.xlane.xlu0 %26
  %v28 = vrcp.pop 32.0
  %v29 = vmul.f32 32.0, %v28
  %v30 = vsub.f32 1.0, %v29
  %v31 = vmul.f32 %v28, %v30
  %v32 = vadd.f32 %v28, %v31
  %vm33 = vweird.f32 %v28
  %v34 = vsel %vm33, %v28, %v32
  %v35 = vmul.f32 %v24, %v34
  %v36 = vmul.f32 %v27, %v34
  %v37 = vadd.f32 %v35, 1e-05
  %v38 = vadd.f32 %v36, 1e-05
  %v39 = vrsqrt.pop %v37
  %v40 = vmul.f32 %v39, %v37
  %v41 = vmul.f32 %v40, %v39
  %v42 = vmul.f32 0.5, %v41
  %v43 = vsub.f32 1.5, %v42
  %v44 = vmul.f32 %v39, %v43
  %vm45 = vweird.f32 %v37
  %vm46 = vweird.f32 %v39
  %vm47 = vmor %vm45, %vm46
  %v48 = vsel %vm47, %v39, %v44
  %v49 = vrsqrt.pop %v38
  %v50 = vmul.f32 %v49, %v38
  %v51 = vmul.f32 %v50, %v49
  %v52 = vmul.f32 0.5, %v51
  %v53 = vsub.f32 1.5, %v52
  %v54 = vmul.f32 %v49, %v53
  %vm55 = vweird.f32 %v38
  %vm56 = vweird.f32 %v49
  %vm57 = vmor %vm55, %vm56
  %v58 = vsel %vm57, %v49, %v54
  %v59 = vmul.f32 %v17, %v48
  %v60 = vmul.f32 %v18, %v58
  %v61 = vld [vmem:[%s1] sm:$0x1]
  %v63 = vperm.slane %v61, 0
  %v65 = vmul.f32 %v59, %v63
  %v66 = vmul.f32 %v60, %v63
  %v67 = vpack.c.bf16 %v66, %v65
  %v68 = vld [vmem:[%s2] sm:$0xf]
  %v69 = vld [vmem:[%s2 + $0x4] sm:$0xf]
  %v70 = vld [vmem:[%s2 + $0x8] sm:$0xf]
  %v71 = vld [vmem:[%s2 + $0xc] sm:$0xf]
  %v76 = vunpack.c.l.b16 %v68
  %v77 = vunpack.c.l.b16 %v69
  %v78 = vunpack.c.l.b16 %v70
  %v79 = vunpack.c.l.b16 %v71
  %v80 = vpack.c.b16 %v77, %v76
  %v81 = vpack.c.b16 %v79, %v78
  %v85 = vsel %vm21, %v67, 0
  %87 = vmatpush.bf16.msra.mxu0 0
  %88 = vmatpush.bf16.msra.mxu0 0
  %89 = vmatpush.bf16.msra.mxu0 0
  %90 = vmatpush.bf16.msra.mxu0 0
  %91 = vmatpush.bf16.msra.mxu0 0
  %92 = vmatpush.bf16.msra.mxu0 0
  %93 = vmatpush.bf16.msra.mxu0 %v81
  %94 = vmatpush.bf16.msra.mxu0 %v80
  %95 = vmatmul.bf16.gmra.mxu0 %v85
  %v96 = vpop.f32.mrf.mxu0
  %v97 = vadd.f32 0.0, %v96
  %v98 = vpop.f32.mrf.mxu0
  %v99 = vadd.f32 0.0, %v98
  %100 = vdwg.mxu0
  %v101 = vpack.c.bf16 %v97, %v97
  %v102 = vpack.c.bf16 %v99, %v99
  %103 = vst [vmem:[%s3] sm:$0xf] %v101
  %104 = vst [vmem:[%s3 + $0x4] sm:$0xf] %v102
  // Predicated region
  $region14: #{transformer_forward.11} parent=0 // pred_check
    _
  $region15: #{transformer_forward.11} parent=0 // pred_check_branch
    %106 = sbr.rel (0) target = $region17
  $region16: #{transformer_forward.11} parent=0 // pred_region
    _
  $region17: #{transformer_forward.11} parent=0 // pred_fallthru
    _
  // Predicated region
  $region18: #{transformer_forward.11} parent=0 // pred_check
    _
  $region19: #{transformer_forward.11} parent=0 // pred_check_branch
    %108 = sbr.rel (0) target = $region21
  $region20: #{transformer_forward.11} parent=0 // pred_region
    _
  $region21: #{transformer_forward.11} parent=0 // pred_fallthru
    _

// kernel: transformer_forward.12
$region0: #{transformer_forward.12}
  #allocation0 [shape = 'u32[]', space=smem, size = 0x4, offset = 0x4, fixed_abs, tag = 'smem constant byte address 0x4 - core index']
  #allocation1 [shape = 'u32[72,128]{1,0:T(1,128)}', space=vmem, size = 0x9000, scoped, tag = 'internal scratch']
  #allocation2 [shape = 'f32[8,1]{1,0:T(8,128)}', space=vmem, size = 0x1000, scoped, tag = 'scratch operand']
  #allocation3 [shape = 'f32[8,1]{1,0:T(8,128)}', space=vmem, size = 0x1000, scoped, tag = 'scratch operand']
  #allocation4 [shape = 'f32[8,8]{1,0:T(8,128)}', space=vmem, size = 0x1000, scoped, tag = 'scratch operand']
  %s0 = inlined_call_operand.vmem [shape: bf16[2,4,8,8], index: 0, kind: input, shape index: {}]
  %s1 = inlined_call_operand.vmem [shape: bf16[2,4,8,8], index: 1, kind: input, shape index: {}]
  %s2 = inlined_call_operand.vmem [shape: bf16[2,4,8,8], index: 2, kind: input, shape index: {}]
  %s3 = inlined_call_operand.vmem [shape: bf16[2,4,8,8], index: 3, kind: output, shape index: {}]
  %s4 = sld [smem:[#allocation0]]
  $region53: #{transformer_forward.12} parent=0
    _
  %s6 = ssub.s32 1, %s4
  %s7 = scalar_select 0, %s6, %s4
  loop: start=0, step=1, limit=10
  $region2: #{transformer_forward.12} parent=0 // loop_pre_header
    _
  $region3: #{transformer_forward.12} parent=0 // loop_header
    %s9 = sphi 0, %s13
    %p10 = scmp.ge.s32.totalorder %s9, 10
    %s16 = sphi 0, %s35
    %s17 = sphi 0, %s31
    %s18 = sphi 0, %s27
    %s19 = sphi 0, %s16
    %s20 = sphi 0, %s17
    %s21 = sphi 0, %s18
    %s22 = sphi 0, %s19
    %s23 = sphi 0, %s20
    %s24 = sphi 0, %s21
    %s40 = sphi 0, %s42
    %s43 = sphi 0, %s40
    %s44 = sphi 0, %s43
    %s60 = sphi 0, %s44
    %s70 = sphi 0, %s72
    %s73 = sphi 0, %s70
    %s74 = sphi 0, %s73
    %s90 = sphi 0, %s74
    %s100 = sphi 0, %s102
    %s103 = sphi 0, %s100
    %s104 = sphi 0, %s103
    %s120 = sphi 0, %s104
    %s128 = sphi 0, %s130
    %s131 = sphi 0, %s128
    %s132 = sphi 0, %s131
    %s148 = sphi 0, %s132
  $region4: #{transformer_forward.12} parent=0 // loop_header_branch
    %12 = sbr.rel (%p10) target = $region8
  $region5: #{transformer_forward.12} parent=0 // loop_body
    %s14 = ssub.s32 %s9, 1
    %s15 = ssub.s32 %s9, 2
    %s25 = sadd.s32 1, %s18
    %p26 = scmp.ge.s32.totalorder %s25, 1
    %s27 = scalar_select %p26, 0, %s25
    %s28 = sadd.s32 1, %s17
    %s29 = scalar_select %p26, %s28, %s17
    %p30 = scmp.ge.s32.totalorder %s29, 4
    %s31 = scalar_select %p30, 0, %s29
    %s32 = sadd.s32 1, %s16
    %s33 = scalar_select %p30, %s32, %s16
    %p34 = scmp.ge.s32.totalorder %s33, 2
    %s35 = scalar_select %p34, 0, %s33
    %s36 = ssub.s32 %s16, %s35
    %s37 = ssub.s32 %s17, %s31
    %s38 = sor.u32 %s36, %s37
    %p39 = scmp.eq.s32.totalorder %s38, 0
    %s41 = sadd.s32 %s40, 1
    %s42 = scalar_select %p39, %s40, %s41
    %p45 = pneg %p39
    %p46 = scmp.eq.s32.totalorder %s9, 7
    %p47 = por %p45, %p46
    %p48 = scmp.ne.s32.totalorder %s40, %s43
    %p49 = scmp.eq.s32.totalorder %s9, 0
    %p50 = por %p48, %p49
    %p51 = scmp.ne.s32.totalorder %s40, %s43
    %p52 = scmp.eq.s32.totalorder %s14, 7
    %p53 = por %p51, %p52
    %p54 = scmp.ne.s32.totalorder %s43, %s44
    %p55 = scmp.eq.s32.totalorder %s14, 0
    %p56 = por %p54, %p55
    %p57 = scmp.ne.s32.totalorder %s43, %s44
    %p58 = scmp.eq.s32.totalorder %s15, 7
    %p59 = por %p57, %p58
    %p61 = scmp.ne.s32.totalorder %s44, %s60
    %p62 = scmp.eq.s32.totalorder %s15, 0
    %p63 = por %p61, %p62
    %s64 = ssub.s32 %s16, %s35
    %s65 = ssub.s32 %s17, %s31
    %s66 = sor.u32 %s64, %s65
    %s67 = ssub.s32 %s18, %s27
    %s68 = sor.u32 %s66, %s67
    %p69 = scmp.eq.s32.totalorder %s68, 0
    %s71 = sadd.s32 %s70, 1
    %s72 = scalar_select %p69, %s70, %s71
    %p75 = pneg %p69
    %p76 = scmp.eq.s32.totalorder %s9, 7
    %p77 = por %p75, %p76
    %p78 = scmp.ne.s32.totalorder %s70, %s73
    %p79 = scmp.eq.s32.totalorder %s9, 0
    %p80 = por %p78, %p79
    %p81 = scmp.ne.s32.totalorder %s70, %s73
    %p82 = scmp.eq.s32.totalorder %s14, 7
    %p83 = por %p81, %p82
    %p84 = scmp.ne.s32.totalorder %s73, %s74
    %p85 = scmp.eq.s32.totalorder %s14, 0
    %p86 = por %p84, %p85
    %p87 = scmp.ne.s32.totalorder %s73, %s74
    %p88 = scmp.eq.s32.totalorder %s15, 7
    %p89 = por %p87, %p88
    %p91 = scmp.ne.s32.totalorder %s74, %s90
    %p92 = scmp.eq.s32.totalorder %s15, 0
    %p93 = por %p91, %p92
    %s94 = ssub.s32 %s16, %s35
    %s95 = ssub.s32 %s17, %s31
    %s96 = sor.u32 %s94, %s95
    %s97 = ssub.s32 %s18, %s27
    %s98 = sor.u32 %s96, %s97
    %p99 = scmp.eq.s32.totalorder %s98, 0
    %s101 = sadd.s32 %s100, 1
    %s102 = scalar_select %p99, %s100, %s101
    %p105 = pneg %p99
    %p106 = scmp.eq.s32.totalorder %s9, 7
    %p107 = por %p105, %p106
    %p108 = scmp.ne.s32.totalorder %s100, %s103
    %p109 = scmp.eq.s32.totalorder %s9, 0
    %p110 = por %p108, %p109
    %p111 = scmp.ne.s32.totalorder %s100, %s103
    %p112 = scmp.eq.s32.totalorder %s14, 7
    %p113 = por %p111, %p112
    %p114 = scmp.ne.s32.totalorder %s103, %s104
    %p115 = scmp.eq.s32.totalorder %s14, 0
    %p116 = por %p114, %p115
    %p117 = scmp.ne.s32.totalorder %s103, %s104
    %p118 = scmp.eq.s32.totalorder %s15, 7
    %p119 = por %p117, %p118
    %p121 = scmp.ne.s32.totalorder %s104, %s120
    %p122 = scmp.eq.s32.totalorder %s15, 0
    %p123 = por %p121, %p122
    %s124 = ssub.s32 %s16, %s35
    %s125 = ssub.s32 %s17, %s31
    %s126 = sor.u32 %s124, %s125
    %p127 = scmp.eq.s32.totalorder %s126, 0
    %s129 = sadd.s32 %s128, 1
    %s130 = scalar_select %p127, %s128, %s129
    %p133 = pneg %p127
    %p134 = scmp.eq.s32.totalorder %s9, 7
    %p135 = por %p133, %p134
    %p136 = scmp.ne.s32.totalorder %s128, %s131
    %p137 = scmp.eq.s32.totalorder %s9, 0
    %p138 = por %p136, %p137
    %p139 = scmp.ne.s32.totalorder %s128, %s131
    %p140 = scmp.eq.s32.totalorder %s14, 7
    %p141 = por %p139, %p140
    %p142 = scmp.ne.s32.totalorder %s131, %s132
    %p143 = scmp.eq.s32.totalorder %s14, 0
    %p144 = por %p142, %p143
    %p145 = scmp.ne.s32.totalorder %s131, %s132
    %p146 = scmp.eq.s32.totalorder %s15, 7
    %p147 = por %p145, %p146
    %p149 = scmp.ne.s32.totalorder %s132, %s148
    %p150 = scmp.eq.s32.totalorder %s15, 0
    %p151 = por %p149, %p150
    %p152 = scmp.le.s32.totalorder 1, %s9
    %p153 = scmp.lt.s32.totalorder %s9, 9
    %p154 = pnand %p152, %p153
    %p155 = pneg %p154
    // Predicated region
    $region9: #{transformer_forward.12} parent=5 // pred_check
      _
    $region10: #{transformer_forward.12} parent=5 // pred_check_branch
      %157 = sbr.rel (%p154) target = $region12
    $region11: #{transformer_forward.12} parent=5 // pred_region
      %s158 = ssub.s32 %s9, 1
    $region12: #{transformer_forward.12} parent=5 // pred_fallthru
      _
    %p159 = scmp.lt.s32.totalorder %s9, 8
    // Predicated region
    $region13: #{transformer_forward.12} parent=5 // pred_check
      %p160 = pneg %p159
    $region14: #{transformer_forward.12} parent=5 // pred_check_branch
      %162 = sbr.rel (%p160) target = $region16
    $region15: #{transformer_forward.12} parent=5 // pred_region
      // Predicated region
      $region17: #{transformer_forward.12} parent=15 // pred_check
        %p163 = pneg %p50
      $region18: #{transformer_forward.12} parent=15 // pred_check_branch
        %165 = sbr.rel (%p163) target = $region20
      $region19: #{transformer_forward.12} parent=15 // pred_region
        %p166 = scmp.lt.s32.totalorder %s16, 1
        %s167 = scalar_select %p166, %s16, 1
        %p168 = scmp.lt.s32.totalorder %s17, 3
        %s169 = scalar_select %p168, %s17, 3
        %s170 = smul.addr %s167, 4
        %s171 = sadd.s32 %s169, %s170
        %s172 = smul.addr %s171, 4
        %s173 = scalar_lea.vmem %s0, %s172
      $region20: #{transformer_forward.12} parent=15 // pred_fallthru
        _
      // Predicated region
      $region21: #{transformer_forward.12} parent=15 // pred_check
        %p174 = pneg %p80
      $region22: #{transformer_forward.12} parent=15 // pred_check_branch
        %176 = sbr.rel (%p174) target = $region24
      $region23: #{transformer_forward.12} parent=15 // pred_region
        %p177 = scmp.lt.s32.totalorder %s16, 1
        %s178 = scalar_select %p177, %s16, 1
        %p179 = scmp.lt.s32.totalorder %s17, 3
        %s180 = scalar_select %p179, %s17, 3
        %p181 = scmp.lt.s32.totalorder %s18, 0
        %s182 = scalar_select %p181, %s18, 0
        %s183 = sadd.s32 %s182, %s180
        %s184 = smul.addr %s178, 4
        %s185 = sadd.s32 %s183, %s184
        %s186 = smul.addr %s185, 4
        %s187 = scalar_lea.vmem %s1, %s186
      $region24: #{transformer_forward.12} parent=15 // pred_fallthru
        _
      // Predicated region
      $region25: #{transformer_forward.12} parent=15 // pred_check
        %p188 = pneg %p110
      $region26: #{transformer_forward.12} parent=15 // pred_check_branch
        %190 = sbr.rel (%p188) target = $region28
      $region27: #{transformer_forward.12} parent=15 // pred_region
        %p191 = scmp.lt.s32.totalorder %s16, 1
        %s192 = scalar_select %p191, %s16, 1
        %p193 = scmp.lt.s32.totalorder %s17, 3
        %s194 = scalar_select %p193, %s17, 3
        %p195 = scmp.lt.s32.totalorder %s18, 0
        %s196 = scalar_select %p195, %s18, 0
        %s197 = sadd.s32 %s196, %s194
        %s198 = smul.addr %s192, 4
        %s199 = sadd.s32 %s197, %s198
        %s200 = smul.addr %s199, 4
        %s201 = scalar_lea.vmem %s2, %s200
      $region28: #{transformer_forward.12} parent=15 // pred_fallthru
        _
    $region16: #{transformer_forward.12} parent=5 // pred_fallthru
      _
    %p202 = scmp.le.s32.totalorder 1, %s9
    %p203 = scmp.lt.s32.totalorder %s9, 9
    %p204 = pnand %p202, %p203
    %p205 = pneg %p204
    // Predicated region
    $region29: #{transformer_forward.12} parent=5 // pred_check
      _
    $region30: #{transformer_forward.12} parent=5 // pred_check_branch
      %207 = sbr.rel (%p204) target = $region32
    $region31: #{transformer_forward.12} parent=5 // pred_region
      %s208 = ssub.s32 %s9, 1
      %p209 = scmp.lt.s32.totalorder %s19, 1
      %s210 = scalar_select %p209, %s19, 1
      %p211 = scmp.lt.s32.totalorder %s20, 3
      %s212 = scalar_select %p211, %s20, 3
      %s213 = smul.addr %s210, 4
      %s214 = sadd.s32 %s212, %s213
      %s215 = smul.addr %s214, 4
      %s216 = scalar_lea.vmem %s0, %s215
      %p217 = pneg %p56
      %p218 = pneg %p53
      %p219 = scmp.lt.s32.totalorder %s19, 1
      %s220 = scalar_select %p219, %s19, 1
      %p221 = scmp.lt.s32.totalorder %s20, 3
      %s222 = scalar_select %p221, %s20, 3
      %p223 = scmp.lt.s32.totalorder %s21, 0
      %s224 = scalar_select %p223, %s21, 0
      %s225 = sadd.s32 %s224, %s222
      %s226 = smul.addr %s220, 4
      %s227 = sadd.s32 %s225, %s226
      %s228 = smul.addr %s227, 4
      %s229 = scalar_lea.vmem %s1, %s228
      %p230 = pneg %p86
      %p231 = pneg %p83
      %p232 = scmp.lt.s32.totalorder %s19, 1
      %s233 = scalar_select %p232, %s19, 1
      %p234 = scmp.lt.s32.totalorder %s20, 3
      %s235 = scalar_select %p234, %s20, 3
      %p236 = scmp.lt.s32.totalorder %s21, 0
      %s237 = scalar_select %p236, %s21, 0
      %s238 = sadd.s32 %s237, %s235
      %s239 = smul.addr %s233, 4
      %s240 = sadd.s32 %s238, %s239
      %s241 = smul.addr %s240, 4
      %s242 = scalar_lea.vmem %s2, %s241
      %p243 = pneg %p116
      %p244 = pneg %p113
      %p245 = pneg %p144
      %p246 = pneg %p141
      %p247 = scmp.lt.s32.totalorder %s19, 1
      %s248 = scalar_select %p247, %s19, 1
      %p249 = scmp.lt.s32.totalorder %s20, 3
      %s250 = scalar_select %p249, %s20, 3
      %s251 = smul.addr %s248, 4
      %s252 = sadd.s32 %s250, %s251
      %s253 = smul.addr %s252, 4
      %s254 = scalar_lea.vmem %s3, %s253
      %p255 = scmp.lt.s32.totalorder %s19, 1
      %s256 = scalar_select %p255, %s19, 1
      %p257 = scmp.lt.s32.totalorder %s20, 3
      %s258 = scalar_select %p257, %s20, 3
      %s259 = smul.addr %s256, 4
      %s260 = sadd.s32 %s258, %s259
      %s261 = smul.addr %s260, 4
      %s262 = scalar_lea.vmem %s0, %s261
      %p263 = scmp.lt.s32.totalorder %s19, 1
      %s264 = scalar_select %p263, %s19, 1
      %p265 = scmp.lt.s32.totalorder %s20, 3
      %s266 = scalar_select %p265, %s20, 3
      %p267 = scmp.lt.s32.totalorder %s21, 0
      %s268 = scalar_select %p267, %s21, 0
      %s269 = sadd.s32 %s268, %s266
      %s270 = smul.addr %s264, 4
      %s271 = sadd.s32 %s269, %s270
      %s272 = smul.addr %s271, 4
      %s273 = scalar_lea.vmem %s1, %s272
      %p274 = scmp.lt.s32.totalorder %s19, 1
      %s275 = scalar_select %p274, %s19, 1
      %p276 = scmp.lt.s32.totalorder %s20, 3
      %s277 = scalar_select %p276, %s20, 3
      %p278 = scmp.lt.s32.totalorder %s21, 0
      %s279 = scalar_select %p278, %s21, 0
      %s280 = sadd.s32 %s279, %s277
      %s281 = smul.addr %s275, 4
      %s282 = sadd.s32 %s280, %s281
      %s283 = smul.addr %s282, 4
      %s284 = scalar_lea.vmem %s2, %s283
      %p285 = scmp.lt.s32.totalorder %s19, 1
      %s286 = scalar_select %p285, %s19, 1
      %p287 = scmp.lt.s32.totalorder %s20, 3
      %s288 = scalar_select %p287, %s20, 3
      %s289 = smul.addr %s286, 4
      %s290 = sadd.s32 %s288, %s289
      %s291 = smul.addr %s290, 4
      %s292 = scalar_lea.vmem %s3, %s291
      %p294 = scmp.eq.s32.totalorder %s21, 0
      // Predicated region
      $region33: #{transformer_forward.12} parent=31 // pred_check
        %p295 = pneg %p294
      $region34: #{transformer_forward.12} parent=31 // pred_check_branch
        %297 = sbr.rel (%p295) target = $region36
      $region35: #{transformer_forward.12} parent=31 // pred_region
        %vm298 = vcmask 7168
        %299 = vst.msk [vmem:[#allocation2] sm:$0xff] %vm298, -1e+30
        %300 = vst.msk [vmem:[#allocation3] sm:$0xff] %vm298, 0.0
        %vm301 = vcmask 64512
        %302 = vst.msk [vmem:[#allocation4] sm:$0xff] %vm301, 0.0
      $region36: #{transformer_forward.12} parent=31 // pred_fallthru
        _
      %v303 = vld [vmem:[%s262] sm:$0xf]
      %v304 = vld [vmem:[%s273] sm:$0xf]
      %v305 = vld [vmem:[%s284] sm:$0xf]
      %vm306 = vcmask 64512
      %v308 = vsel %vm306, %v303, 0
      %v311 = vsel %vm306, %v304, 0
      %313 = vmatpush.bf16.xpose.msra.mxu0 0
      %314 = vmatpush.bf16.xpose.msra.mxu0 0
      %315 = vmatpush.bf16.xpose.msra.mxu0 0
      %316 = vmatpush.bf16.xpose.msra.mxu0 0
      %317 = vmatpush.bf16.xpose.msra.mxu0 0
      %318 = vmatpush.bf16.xpose.msra.mxu0 0
      %319 = vmatpush.bf16.xpose.msra.mxu0 0
      %320 = vmatpush.bf16.xpose.msra.mxu0 %v311
      %321 = vmatmul.bf16.gmra.mxu0 %v308
      %v322 = vpop.f32.mrf.mxu0
      %v323 = vadd.f32 0.0, %v322
      %v324 = vpop.f32.mrf.mxu0
      %325 = vdwg.mxu0
      %v326 = vmul.f32 %v323, 0.35355338
      %v327 = vlaneseq
      %v328 = vshrl.u32 %v327, 7
      %v329 = vlaneseq
      %v330 = vand.u32 %v329, 127
      %s331 = smul.u32 %s21, 8
      %v332 = vstv %s331
      %v333 = vadd.s32 %v330, %v332
      %vm334 = vcmp.le.s32.totalorder %v333, %v328
      %v335 = vsel %vm334, %v326, -1e+30
      %v336 = vld [vmem:[#allocation2] sm:$0xff]
      %v337 = vsel %vm306, %v335, -inf
      %338 = vmax.xlane.f32.xlu0 %v337
      %v339 = vpop.xlane.xlu0 %338
      %v340 = vmax.f32 %v336, %v339
      %v341 = vsub.f32 %v336, %v340
      %v342 = vmul.f32 %v341, 1.442695
      %v343 = vpow.pop %v342
      %345 = vset.pattern.permute.xlu0 0
      %346 = vperm.xlu0 %345, %v340
      %v347 = vpop.permute.xlu0 %346
      %v349 = vsub.f32 %v335, %v347
      %v350 = vmul.f32 %v349, 1.442695
      %v351 = vpow.pop %v350
      %v352 = vld [vmem:[#allocation3] sm:$0xff]
      %v353 = vmul.f32 %v343, %v352
      %v354 = vsel %vm306, %v351, 0.0
      %355 = vadd.xlane.f32.xlu0 %v354
      %v356 = vpop.xlane.xlu0 %355
      %v357 = vadd.f32 %v353, %v356
      %vm358 = vcmask 7168
      %359 = vst.msk [vmem:[#allocation3] sm:$0xff] %vm358, %v357
      %v360 = vld [vmem:[#allocation4] sm:$0xff]
      %362 = vset.pattern.permute.xlu0 0
      %363 = vperm.xlu0 %362, %v343
      %v364 = vpop.permute.xlu0 %363
      %v366 = vmul.f32 %v364, %v360
      %v367 = vpack.c.bf16 %v351, %v351
      %v369 = vsel %vm306, %v367, 0
      %vm371 = vcmask 1043456
      %v373 = vsel %vm371, %v305, 0
      %375 = vmatpush.bf16.msra.mxu0 0
      %376 = vmatpush.bf16.msra.mxu0 0
      %377 = vmatpush.bf16.msra.mxu0 0
      %378 = vmatpush.bf16.msra.mxu0 0
      %379 = vmatpush.bf16.msra.mxu0 0
      %380 = vmatpush.bf16.msra.mxu0 0
      %381 = vmatpush.bf16.msra.mxu0 0
      %382 = vmatpush.bf16.msra.mxu0 %v373
      %383 = vmatmul.bf16.gmra.mxu0 %v369
      %v384 = vpop.f32.mrf.mxu0
      %v385 = vadd.f32 0.0, %v384
      %v386 = vpop.f32.mrf.mxu0
      %387 = vdwg.mxu0
      %v388 = vadd.f32 %v366, %v385
      %389 = vst.msk [vmem:[#allocation4] sm:$0xff] %vm306, %v388
      %390 = vst.msk [vmem:[#allocation2] sm:$0xff] %vm358, %v340
      // Predicated region
      $region37: #{transformer_forward.12} parent=31 // pred_check
        %p391 = pneg %p294
      $region38: #{transformer_forward.12} parent=31 // pred_check_branch
        %393 = sbr.rel (%p391) target = $region40
      $region39: #{transformer_forward.12} parent=31 // pred_region
        %v394 = vld [vmem:[#allocation4] sm:$0xff]
        %v395 = vld [vmem:[#allocation3] sm:$0xff]
        %v396 = vrcp.pop %v395
        %398 = vset.pattern.permute.xlu0 0
        %399 = vperm.xlu0 %398, %v396
        %v400 = vpop.permute.xlu0 %399
        %v402 = vmul.f32 %v394, %v400
        %v403 = vpack.c.bf16 %v402, %v402
        %vm404 = vcmask 60416
        %405 = vst.msk [vmem:[%s292] sm:$0xf] %vm404, %v403
      $region40: #{transformer_forward.12} parent=31 // pred_fallthru
        _
      %p406 = scmp.lt.s32.totalorder %s19, 1
      %s407 = scalar_select %p406, %s19, 1
      %p408 = scmp.lt.s32.totalorder %s20, 3
      %s409 = scalar_select %p408, %s20, 3
      %s410 = smul.addr %s407, 4
      %s411 = sadd.s32 %s409, %s410
      %s412 = smul.addr %s411, 4
      %s413 = scalar_lea.vmem %s3, %s412
      // Predicated region
      $region41: #{transformer_forward.12} parent=31 // pred_check
        %p414 = pneg %p141
      $region42: #{transformer_forward.12} parent=31 // pred_check_branch
        %416 = sbr.rel (%p414) target = $region44
      $region43: #{transformer_forward.12} parent=31 // pred_region
        _
      $region44: #{transformer_forward.12} parent=31 // pred_fallthru
        _
    $region32: #{transformer_forward.12} parent=5 // pred_fallthru
      _
    %p417 = scmp.le.s32.totalorder 2, %s9
    // Predicated region
    $region45: #{transformer_forward.12} parent=5 // pred_check
      %p418 = pneg %p417
    $region46: #{transformer_forward.12} parent=5 // pred_check_branch
      %420 = sbr.rel (%p418) target = $region48
    $region47: #{transformer_forward.12} parent=5 // pred_region
      %s421 = ssub.s32 %s9, 2
      // Predicated region
      $region49: #{transformer_forward.12} parent=47 // pred_check
        %p422 = pneg %p147
      $region50: #{transformer_forward.12} parent=47 // pred_check_branch
        %424 = sbr.rel (%p422) target = $region52
      $region51: #{transformer_forward.12} parent=47 // pred_region
        %p425 = scmp.lt.s32.totalorder %s22, 1
        %s426 = scalar_select %p425, %s22, 1
        %p427 = scmp.lt.s32.totalorder %s23, 3
        %s428 = scalar_select %p427, %s23, 3
        %s429 = smul.addr %s426, 4
        %s430 = sadd.s32 %s428, %s429
        %s431 = smul.addr %s430, 4
        %s432 = scalar_lea.vmem %s3, %s431
      $region52: #{transformer_forward.12} parent=47 // pred_fallthru
        _
    $region48: #{transformer_forward.12} parent=5 // pred_fallthru
      _
  $region6: #{transformer_forward.12} parent=0 // loop_footer
    %s13 = sadd.s32 1, %s9
  $region7: #{transformer_forward.12} parent=0 // loop_footer_branch
    %8 = sbr.rel target = $region3
  $region8: #{transformer_forward.12} parent=0 // loop_exit
    _

// kernel: transformer_forward.13
$region0: #{transformer_forward.13}
  #allocation0 [shape = 'u32[]', space=smem, size = 0x4, offset = 0x4, fixed_abs, tag = 'smem constant byte address 0x4 - core index']
  #allocation1 [shape = 'u32[72,128]{1,0:T(1,128)}', space=vmem, size = 0x9000, scoped, tag = 'internal scratch']
  #allocation2 [shape = 'f32[16,128]{1,0:T(8,128)}', space=vmem, size = 0x2000, scoped, tag = 'scratch operand']
  %s0 = inlined_call_operand.vmem [shape: bf16[16,128], index: 0, kind: input, shape index: {}]
  %s1 = inlined_call_operand.vmem [shape: bf16[128,128], index: 1, kind: input, shape index: {}]
  %s2 = inlined_call_operand.vmem [shape: bf16[16,128], index: 2, kind: input, shape index: {}]
  %s3 = inlined_call_operand.vmem [shape: bf16[16,128], index: 3, kind: output, shape index: {}]
  %s4 = sld [smem:[#allocation0]]
  $region30: #{transformer_forward.13} parent=0
    _
  %s6 = ssub.s32 1, %s4
  %s7 = scalar_select 0, %s6, %s4
  // Predicated region
  $region2: #{transformer_forward.13} parent=0 // pred_check
    _
  $region3: #{transformer_forward.13} parent=0 // pred_check_branch
    %9 = sbr.rel (0) target = $region5
  $region4: #{transformer_forward.13} parent=0 // pred_region
    _
  $region5: #{transformer_forward.13} parent=0 // pred_fallthru
    _
  // Predicated region
  $region6: #{transformer_forward.13} parent=0 // pred_check
    _
  $region7: #{transformer_forward.13} parent=0 // pred_check_branch
    %11 = sbr.rel (0) target = $region9
  $region8: #{transformer_forward.13} parent=0 // pred_region
    _
  $region9: #{transformer_forward.13} parent=0 // pred_fallthru
    _
  // Predicated region
  $region10: #{transformer_forward.13} parent=0 // pred_check
    _
  $region11: #{transformer_forward.13} parent=0 // pred_check_branch
    %13 = sbr.rel (0) target = $region13
  $region12: #{transformer_forward.13} parent=0 // pred_region
    _
  $region13: #{transformer_forward.13} parent=0 // pred_fallthru
    _
  %p14 = scmp.eq.s32.totalorder 0, 0
  // Predicated region
  $region14: #{transformer_forward.13} parent=0 // pred_check
    %p15 = pneg %p14
  $region15: #{transformer_forward.13} parent=0 // pred_check_branch
    %17 = sbr.rel (%p15) target = $region17
  $region16: #{transformer_forward.13} parent=0 // pred_region
    %18 = vst [vmem:[#allocation2] sm:$0xff] 0.0
    %19 = vst [vmem:[#allocation2 + $0x8] sm:$0xff] 0.0
  $region17: #{transformer_forward.13} parent=0 // pred_fallthru
    _
  %v20 = vld [vmem:[#allocation2] sm:$0xff]
  %v21 = vld [vmem:[#allocation2 + $0x8] sm:$0xff]
  %v22 = vld [vmem:[%s0] sm:$0xf]
  %v23 = vld [vmem:[%s0 + $0x4] sm:$0xf]
  %v24 = vld [vmem:[%s1] sm:$0xf]
  %v25 = vld [vmem:[%s1 + $0x4] sm:$0xf]
  %v26 = vld [vmem:[%s1 + $0x8] sm:$0xf]
  %v27 = vld [vmem:[%s1 + $0xc] sm:$0xf]
  %v28 = vld [vmem:[%s1 + $0x10] sm:$0xf]
  %v29 = vld [vmem:[%s1 + $0x14] sm:$0xf]
  %v30 = vld [vmem:[%s1 + $0x18] sm:$0xf]
  %v31 = vld [vmem:[%s1 + $0x1c] sm:$0xf]
  %v32 = vld [vmem:[%s1 + $0x20] sm:$0xf]
  %v33 = vld [vmem:[%s1 + $0x24] sm:$0xf]
  %v34 = vld [vmem:[%s1 + $0x28] sm:$0xf]
  %v35 = vld [vmem:[%s1 + $0x2c] sm:$0xf]
  %v36 = vld [vmem:[%s1 + $0x30] sm:$0xf]
  %v37 = vld [vmem:[%s1 + $0x34] sm:$0xf]
  %v38 = vld [vmem:[%s1 + $0x38] sm:$0xf]
  %v39 = vld [vmem:[%s1 + $0x3c] sm:$0xf]
  %v42 = vunpack.c.l.b16 %v22
  %v43 = vunpack.c.l.b16 %v23
  %v44 = vpack.c.b16 %v43, %v42
  %v62 = vunpack.c.l.b16 %v24
  %v63 = vunpack.c.l.b16 %v25
  %v64 = vunpack.c.l.b16 %v26
  %v65 = vunpack.c.l.b16 %v27
  %v66 = vunpack.c.l.b16 %v28
  %v67 = vunpack.c.l.b16 %v29
  %v68 = vunpack.c.l.b16 %v30
  %v69 = vunpack.c.l.b16 %v31
  %v70 = vunpack.c.l.b16 %v32
  %v71 = vunpack.c.l.b16 %v33
  %v72 = vunpack.c.l.b16 %v34
  %v73 = vunpack.c.l.b16 %v35
  %v74 = vunpack.c.l.b16 %v36
  %v75 = vunpack.c.l.b16 %v37
  %v76 = vunpack.c.l.b16 %v38
  %v77 = vunpack.c.l.b16 %v39
  %v78 = vpack.c.b16 %v63, %v62
  %v79 = vpack.c.b16 %v65, %v64
  %v80 = vpack.c.b16 %v67, %v66
  %v81 = vpack.c.b16 %v69, %v68
  %v82 = vpack.c.b16 %v71, %v70
  %v83 = vpack.c.b16 %v73, %v72
  %v84 = vpack.c.b16 %v75, %v74
  %v85 = vpack.c.b16 %v77, %v76
  %94 = vmatpush.bf16.msra.mxu0 %v85
  %95 = vmatpush.bf16.msra.mxu0 %v84
  %96 = vmatpush.bf16.msra.mxu0 %v83
  %97 = vmatpush.bf16.msra.mxu0 %v82
  %98 = vmatpush.bf16.msra.mxu0 %v81
  %99 = vmatpush.bf16.msra.mxu0 %v80
  %100 = vmatpush.bf16.msra.mxu0 %v79
  %101 = vmatpush.bf16.msra.mxu0 %v78
  %102 = vmatmul.bf16.gmra.mxu0 %v44
  %v103 = vpop.f32.mrf.mxu0
  %v104 = vadd.f32 0.0, %v103
  %v105 = vpop.f32.mrf.mxu0
  %v106 = vadd.f32 0.0, %v105
  %107 = vdwg.mxu0
  %v108 = vadd.f32 %v20, %v104
  %v109 = vadd.f32 %v21, %v106
  %110 = vst [vmem:[#allocation2] sm:$0xff] %v108
  %111 = vst [vmem:[#allocation2 + $0x8] sm:$0xff] %v109
  // Predicated region
  $region18: #{transformer_forward.13} parent=0 // pred_check
    %p112 = pneg %p14
  $region19: #{transformer_forward.13} parent=0 // pred_check_branch
    %114 = sbr.rel (%p112) target = $region21
  $region20: #{transformer_forward.13} parent=0 // pred_region
    %v115 = vld [vmem:[#allocation2] sm:$0xff]
    %v116 = vld [vmem:[#allocation2 + $0x8] sm:$0xff]
    %v117 = vld [vmem:[%s2] sm:$0xf]
    %v118 = vld [vmem:[%s2 + $0x4] sm:$0xf]
    %v119 = vunpack.c.l.bf16 %v117
    %v120 = vunpack.c.l.bf16 %v118
    %v121 = vadd.f32 %v115, %v119
    %v122 = vadd.f32 %v116, %v120
    %v123 = vpack.c.bf16 %v121, %v121
    %v124 = vpack.c.bf16 %v122, %v122
    %125 = vst [vmem:[%s3] sm:$0xf] %v123
    %126 = vst [vmem:[%s3 + $0x4] sm:$0xf] %v124
  $region21: #{transformer_forward.13} parent=0 // pred_fallthru
    _
  // Predicated region
  $region22: #{transformer_forward.13} parent=0 // pred_check
    _
  $region23: #{transformer_forward.13} parent=0 // pred_check_branch
    %128 = sbr.rel (0) target = $region25
  $region24: #{transformer_forward.13} parent=0 // pred_region
    _
  $region25: #{transformer_forward.13} parent=0 // pred_fallthru
    _
  // Predicated region
  $region26: #{transformer_forward.13} parent=0 // pred_check
    _
  $region27: #{transformer_forward.13} parent=0 // pred_check_branch
    %130 = sbr.rel (0) target = $region29
  $region28: #{transformer_forward.13} parent=0 // pred_region
    _
  $region29: #{transformer_forward.13} parent=0 // pred_fallthru
    _

// kernel: transformer_forward.14
$region0: #{transformer_forward.14}
  #allocation0 [shape = 'u32[]', space=smem, size = 0x4, offset = 0x4, fixed_abs, tag = 'smem constant byte address 0x4 - core index']
  #allocation1 [shape = 'u32[72,128]{1,0:T(1,128)}', space=vmem, size = 0x9000, scoped, tag = 'internal scratch']
  %s0 = inlined_call_operand.vmem [shape: bf16[16,32], index: 0, kind: input, shape index: {}]
  %s1 = inlined_call_operand.vmem [shape: f32[1,32], index: 1, kind: input, shape index: {}]
  %s2 = inlined_call_operand.vmem [shape: bf16[32,128], index: 2, kind: input, shape index: {}]
  %s3 = inlined_call_operand.vmem [shape: bf16[32,128], index: 3, kind: input, shape index: {}]
  %s4 = inlined_call_operand.vmem [shape: bf16[16,128], index: 4, kind: output, shape index: {}]
  %s5 = sld [smem:[#allocation0]]
  $region26: #{transformer_forward.14} parent=0
    _
  %s7 = ssub.s32 1, %s5
  %s8 = scalar_select 0, %s7, %s5
  // Predicated region
  $region2: #{transformer_forward.14} parent=0 // pred_check
    _
  $region3: #{transformer_forward.14} parent=0 // pred_check_branch
    %10 = sbr.rel (0) target = $region5
  $region4: #{transformer_forward.14} parent=0 // pred_region
    _
  $region5: #{transformer_forward.14} parent=0 // pred_fallthru
    _
  // Predicated region
  $region6: #{transformer_forward.14} parent=0 // pred_check
    _
  $region7: #{transformer_forward.14} parent=0 // pred_check_branch
    %12 = sbr.rel (0) target = $region9
  $region8: #{transformer_forward.14} parent=0 // pred_region
    _
  $region9: #{transformer_forward.14} parent=0 // pred_fallthru
    _
  // Predicated region
  $region10: #{transformer_forward.14} parent=0 // pred_check
    _
  $region11: #{transformer_forward.14} parent=0 // pred_check_branch
    %14 = sbr.rel (0) target = $region13
  $region12: #{transformer_forward.14} parent=0 // pred_region
    _
  $region13: #{transformer_forward.14} parent=0 // pred_fallthru
    _
  // Predicated region
  $region14: #{transformer_forward.14} parent=0 // pred_check
    _
  $region15: #{transformer_forward.14} parent=0 // pred_check_branch
    %16 = sbr.rel (0) target = $region17
  $region16: #{transformer_forward.14} parent=0 // pred_region
    _
  $region17: #{transformer_forward.14} parent=0 // pred_fallthru
    _
  %v18 = vld [vmem:[%s0] sm:$0xf]
  %v19 = vld [vmem:[%s0 + $0x4] sm:$0xf]
  %v20 = vunpack.c.l.bf16 %v18
  %v21 = vunpack.c.l.bf16 %v19
  %v22 = vmul.f32 %v20, %v20
  %v23 = vmul.f32 %v21, %v21
  %vm24 = vcmask 261120
  %v25 = vsel %vm24, %v22, 0.0
  %26 = vadd.xlane.f32.xlu0 %v25
  %v27 = vpop.xlane.xlu0 %26
  %v28 = vsel %vm24, %v23, 0.0
  %29 = vadd.xlane.f32.xlu0 %v28
  %v30 = vpop.xlane.xlu0 %29
  %v31 = vrcp.pop 32.0
  %v32 = vmul.f32 32.0, %v31
  %v33 = vsub.f32 1.0, %v32
  %v34 = vmul.f32 %v31, %v33
  %v35 = vadd.f32 %v31, %v34
  %vm36 = vweird.f32 %v31
  %v37 = vsel %vm36, %v31, %v35
  %v38 = vmul.f32 %v27, %v37
  %v39 = vmul.f32 %v30, %v37
  %v40 = vadd.f32 %v38, 1e-05
  %v41 = vadd.f32 %v39, 1e-05
  %v42 = vrsqrt.pop %v40
  %v43 = vmul.f32 %v42, %v40
  %v44 = vmul.f32 %v43, %v42
  %v45 = vmul.f32 0.5, %v44
  %v46 = vsub.f32 1.5, %v45
  %v47 = vmul.f32 %v42, %v46
  %vm48 = vweird.f32 %v40
  %vm49 = vweird.f32 %v42
  %vm50 = vmor %vm48, %vm49
  %v51 = vsel %vm50, %v42, %v47
  %v52 = vrsqrt.pop %v41
  %v53 = vmul.f32 %v52, %v41
  %v54 = vmul.f32 %v53, %v52
  %v55 = vmul.f32 0.5, %v54
  %v56 = vsub.f32 1.5, %v55
  %v57 = vmul.f32 %v52, %v56
  %vm58 = vweird.f32 %v41
  %vm59 = vweird.f32 %v52
  %vm60 = vmor %vm58, %vm59
  %v61 = vsel %vm60, %v52, %v57
  %v62 = vmul.f32 %v20, %v51
  %v63 = vmul.f32 %v21, %v61
  %v64 = vld [vmem:[%s1] sm:$0x1]
  %v66 = vperm.slane %v64, 0
  %v68 = vmul.f32 %v62, %v66
  %v69 = vmul.f32 %v63, %v66
  %v70 = vpack.c.bf16 %v69, %v68
  %v71 = vld [vmem:[%s2] sm:$0xf]
  %v72 = vld [vmem:[%s2 + $0x4] sm:$0xf]
  %v73 = vld [vmem:[%s2 + $0x8] sm:$0xf]
  %v74 = vld [vmem:[%s2 + $0xc] sm:$0xf]
  %v79 = vunpack.c.l.b16 %v71
  %v80 = vunpack.c.l.b16 %v72
  %v81 = vunpack.c.l.b16 %v73
  %v82 = vunpack.c.l.b16 %v74
  %v83 = vpack.c.b16 %v80, %v79
  %v84 = vpack.c.b16 %v82, %v81
  %v88 = vsel %vm24, %v70, 0
  %90 = vmatpush.bf16.msra.mxu0 0
  %91 = vmatpush.bf16.msra.mxu0 0
  %92 = vmatpush.bf16.msra.mxu0 0
  %93 = vmatpush.bf16.msra.mxu0 0
  %94 = vmatpush.bf16.msra.mxu0 0
  %95 = vmatpush.bf16.msra.mxu0 0
  %96 = vmatpush.bf16.msra.mxu0 %v84
  %97 = vmatpush.bf16.msra.mxu0 %v83
  %98 = vmatmul.bf16.gmra.mxu0 %v88
  %v99 = vpop.f32.mrf.mxu0
  %v100 = vadd.f32 0.0, %v99
  %v101 = vpop.f32.mrf.mxu0
  %v102 = vadd.f32 0.0, %v101
  %103 = vdwg.mxu0
  %v104 = vld [vmem:[%s3] sm:$0xf]
  %v105 = vld [vmem:[%s3 + $0x4] sm:$0xf]
  %v106 = vld [vmem:[%s3 + $0x8] sm:$0xf]
  %v107 = vld [vmem:[%s3 + $0xc] sm:$0xf]
  %v112 = vunpack.c.l.b16 %v104
  %v113 = vunpack.c.l.b16 %v105
  %v114 = vunpack.c.l.b16 %v106
  %v115 = vunpack.c.l.b16 %v107
  %v116 = vpack.c.b16 %v113, %v112
  %v117 = vpack.c.b16 %v115, %v114
  %120 = vmatpush.bf16.msra.mxu0 0
  %121 = vmatpush.bf16.msra.mxu0 0
  %122 = vmatpush.bf16.msra.mxu0 0
  %123 = vmatpush.bf16.msra.mxu0 0
  %124 = vmatpush.bf16.msra.mxu0 0
  %125 = vmatpush.bf16.msra.mxu0 0
  %126 = vmatpush.bf16.msra.mxu0 %v117
  %127 = vmatpush.bf16.msra.mxu0 %v116
  %128 = vmatmul.bf16.gmra.mxu0 %v88
  %v129 = vpop.f32.mrf.mxu0
  %v130 = vadd.f32 0.0, %v129
  %v131 = vpop.f32.mrf.mxu0
  %v132 = vadd.f32 0.0, %v131
  %133 = vdwg.mxu0
  %v134 = vxor.u32 %v100, 2147483648
  %v135 = vxor.u32 %v102, 2147483648
  %v136 = vmul.f32 %v134, 1.442695
  %v137 = vpow.pop %v136
  %v138 = vmul.f32 %v135, 1.442695
  %v139 = vpow.pop %v138
  %v140 = vadd.f32 %v137, 1.0
  %v141 = vadd.f32 %v139, 1.0
  %v142 = vrcp.pop %v140
  %v143 = vmul.f32 %v140, %v142
  %v144 = vsub.f32 1.0, %v143
  %v145 = vmul.f32 %v142, %v144
  %v146 = vadd.f32 %v142, %v145
  %vm147 = vweird.f32 %v140
  %vm148 = vweird.f32 %v142
  %vm149 = vmor %vm147, %vm148
  %v150 = vsel %vm149, %v142, %v146
  %v151 = vand.u32 2147483647, %v140
  %vm152 = vcmp.eq.f32.partialorder %v151, 8.507059e+37
  %v153 = vand.u32 %v140, 2147483648
  %v154 = vor.u32 1.1754944e-38, %v153
  %v155 = vsel %vm152, %v154, %v150
  %v156 = vmul.f32 1.0, %v155
  %v157 = vrcp.pop %v141
  %v158 = vmul.f32 %v141, %v157
  %v159 = vsub.f32 1.0, %v158
  %v160 = vmul.f32 %v157, %v159
  %v161 = vadd.f32 %v157, %v160
  %vm162 = vweird.f32 %v141
  %vm163 = vweird.f32 %v157
  %vm164 = vmor %vm162, %vm163
  %v165 = vsel %vm164, %v157, %v161
  %v166 = vand.u32 2147483647, %v141
  %vm167 = vcmp.eq.f32.partialorder %v166, 8.507059e+37
  %v168 = vand.u32 %v141, 2147483648
  %v169 = vor.u32 1.1754944e-38, %v168
  %v170 = vsel %vm167, %v169, %v165
  %v171 = vmul.f32 1.0, %v170
  %v172 = vmul.f32 %v100, %v156
  %v173 = vmul.f32 %v102, %v171
  %v174 = vmul.f32 %v172, %v130
  %v175 = vmul.f32 %v173, %v132
  %v176 = vpack.c.bf16 %v174, %v174
  %v177 = vpack.c.bf16 %v175, %v175
  %178 = vst [vmem:[%s4] sm:$0xf] %v176
  %179 = vst [vmem:[%s4 + $0x4] sm:$0xf] %v177
  // Predicated region
  $region18: #{transformer_forward.14} parent=0 // pred_check
    _
  $region19: #{transformer_forward.14} parent=0 // pred_check_branch
    %181 = sbr.rel (0) target = $region21
  $region20: #{transformer_forward.14} parent=0 // pred_region
    _
  $region21: #{transformer_forward.14} parent=0 // pred_fallthru
    _
  // Predicated region
  $region22: #{transformer_forward.14} parent=0 // pred_check
    _
  $region23: #{transformer_forward.14} parent=0 // pred_check_branch
    %183 = sbr.rel (0) target = $region25
  $region24: #{transformer_forward.14} parent=0 // pred_region
    _
  $region25: #{transformer_forward.14} parent=0 // pred_fallthru
    _

// kernel: transformer_forward.21
$region0: #{transformer_forward.21}
  #allocation0 [shape = 'u32[]', space=smem, size = 0x4, offset = 0x4, fixed_abs, tag = 'smem constant byte address 0x4 - core index']
  #allocation1 [shape = 'u32[72,128]{1,0:T(1,128)}', space=vmem, size = 0x9000, scoped, tag = 'internal scratch']
  %s0 = inlined_call_operand.vmem [shape: bf16[16,32], index: 0, kind: input, shape index: {}]
  %s1 = inlined_call_operand.vmem [shape: f32[1,32], index: 1, kind: input, shape index: {}]
  %s2 = inlined_call_operand.vmem [shape: bf16[32,256], index: 2, kind: input, shape index: {}]
  %s3 = inlined_call_operand.vmem [shape: f32[16,256], index: 3, kind: output, shape index: {}]
  %s4 = sld [smem:[#allocation0]]
  $region22: #{transformer_forward.21} parent=0
    _
  %s6 = ssub.s32 1, %s4
  %s7 = scalar_select 0, %s6, %s4
  // Predicated region
  $region2: #{transformer_forward.21} parent=0 // pred_check
    _
  $region3: #{transformer_forward.21} parent=0 // pred_check_branch
    %9 = sbr.rel (0) target = $region5
  $region4: #{transformer_forward.21} parent=0 // pred_region
    _
  $region5: #{transformer_forward.21} parent=0 // pred_fallthru
    _
  // Predicated region
  $region6: #{transformer_forward.21} parent=0 // pred_check
    _
  $region7: #{transformer_forward.21} parent=0 // pred_check_branch
    %11 = sbr.rel (0) target = $region9
  $region8: #{transformer_forward.21} parent=0 // pred_region
    _
  $region9: #{transformer_forward.21} parent=0 // pred_fallthru
    _
  // Predicated region
  $region10: #{transformer_forward.21} parent=0 // pred_check
    _
  $region11: #{transformer_forward.21} parent=0 // pred_check_branch
    %13 = sbr.rel (0) target = $region13
  $region12: #{transformer_forward.21} parent=0 // pred_region
    _
  $region13: #{transformer_forward.21} parent=0 // pred_fallthru
    _
  %v15 = vld [vmem:[%s0] sm:$0xf]
  %v16 = vld [vmem:[%s0 + $0x4] sm:$0xf]
  %v17 = vunpack.c.l.bf16 %v15
  %v18 = vunpack.c.l.bf16 %v16
  %v19 = vmul.f32 %v17, %v17
  %v20 = vmul.f32 %v18, %v18
  %vm21 = vcmask 261120
  %v22 = vsel %vm21, %v19, 0.0
  %23 = vadd.xlane.f32.xlu0 %v22
  %v24 = vpop.xlane.xlu0 %23
  %v25 = vsel %vm21, %v20, 0.0
  %26 = vadd.xlane.f32.xlu0 %v25
  %v27 = vpop.xlane.xlu0 %26
  %v28 = vrcp.pop 32.0
  %v29 = vmul.f32 32.0, %v28
  %v30 = vsub.f32 1.0, %v29
  %v31 = vmul.f32 %v28, %v30
  %v32 = vadd.f32 %v28, %v31
  %vm33 = vweird.f32 %v28
  %v34 = vsel %vm33, %v28, %v32
  %v35 = vmul.f32 %v24, %v34
  %v36 = vmul.f32 %v27, %v34
  %v37 = vadd.f32 %v35, 1e-05
  %v38 = vadd.f32 %v36, 1e-05
  %v39 = vrsqrt.pop %v37
  %v40 = vmul.f32 %v39, %v37
  %v41 = vmul.f32 %v40, %v39
  %v42 = vmul.f32 0.5, %v41
  %v43 = vsub.f32 1.5, %v42
  %v44 = vmul.f32 %v39, %v43
  %vm45 = vweird.f32 %v37
  %vm46 = vweird.f32 %v39
  %vm47 = vmor %vm45, %vm46
  %v48 = vsel %vm47, %v39, %v44
  %v49 = vrsqrt.pop %v38
  %v50 = vmul.f32 %v49, %v38
  %v51 = vmul.f32 %v50, %v49
  %v52 = vmul.f32 0.5, %v51
  %v53 = vsub.f32 1.5, %v52
  %v54 = vmul.f32 %v49, %v53
  %vm55 = vweird.f32 %v38
  %vm56 = vweird.f32 %v49
  %vm57 = vmor %vm55, %vm56
  %v58 = vsel %vm57, %v49, %v54
  %v59 = vmul.f32 %v17, %v48
  %v60 = vmul.f32 %v18, %v58
  %v61 = vld [vmem:[%s1] sm:$0x1]
  %v63 = vperm.slane %v61, 0
  %v65 = vmul.f32 %v59, %v63
  %v66 = vmul.f32 %v60, %v63
  %v67 = vpack.c.bf16 %v66, %v65
  %v68 = vld [vmem:[%s2] sm:$0xff]
  %v69 = vld [vmem:[%s2 + $0x8] sm:$0xff]
  %v70 = vld [vmem:[%s2 + $0x10] sm:$0xff]
  %v71 = vld [vmem:[%s2 + $0x18] sm:$0xff]
  %v76 = vunpack.c.l.b16 %v68
  %v77 = vunpack.c.h.b16 %v68
  %v78 = vunpack.c.l.b16 %v69
  %v79 = vunpack.c.h.b16 %v69
  %v80 = vunpack.c.l.b16 %v70
  %v81 = vunpack.c.h.b16 %v70
  %v82 = vunpack.c.l.b16 %v71
  %v83 = vunpack.c.h.b16 %v71
  %v84 = vpack.c.b16 %v78, %v76
  %v85 = vpack.c.b16 %v79, %v77
  %v86 = vpack.c.b16 %v82, %v80
  %v87 = vpack.c.b16 %v83, %v81
  %v93 = vsel %vm21, %v67, 0
  %95 = vmatpush.bf16.msra.mxu0 0
  %96 = vmatpush.bf16.msra.mxu0 0
  %97 = vmatpush.bf16.msra.mxu0 0
  %98 = vmatpush.bf16.msra.mxu0 0
  %99 = vmatpush.bf16.msra.mxu0 0
  %100 = vmatpush.bf16.msra.mxu0 0
  %101 = vmatpush.bf16.msra.mxu0 %v86
  %102 = vmatpush.bf16.msra.mxu0 %v84
  %103 = vmatmul.bf16.gmra.mxu0 %v93
  %v104 = vpop.f32.mrf.mxu0
  %v105 = vadd.f32 0.0, %v104
  %v106 = vpop.f32.mrf.mxu0
  %v107 = vadd.f32 0.0, %v106
  %108 = vdwg.mxu0
  %109 = vmatpush.bf16.msra.mxu0 0
  %110 = vmatpush.bf16.msra.mxu0 0
  %111 = vmatpush.bf16.msra.mxu0 0
  %112 = vmatpush.bf16.msra.mxu0 0
  %113 = vmatpush.bf16.msra.mxu0 0
  %114 = vmatpush.bf16.msra.mxu0 0
  %115 = vmatpush.bf16.msra.mxu0 %v87
  %116 = vmatpush.bf16.msra.mxu0 %v85
  %117 = vmatmul.bf16.gmra.mxu0 %v93
  %v118 = vpop.f32.mrf.mxu0
  %v119 = vadd.f32 0.0, %v118
  %v120 = vpop.f32.mrf.mxu0
  %v121 = vadd.f32 0.0, %v120
  %122 = vdwg.mxu0
  %123 = vst [vmem:[%s3] sm:$0xff] %v105
  %124 = vst [vmem:[%s3 + $0x8] sm:$0xff] %v119
  %125 = vst [vmem:[%s3 + $0x10] sm:$0xff] %v107
  %126 = vst [vmem:[%s3 + $0x18] sm:$0xff] %v121
  // Predicated region
  $region14: #{transformer_forward.21} parent=0 // pred_check
    _
  $region15: #{transformer_forward.21} parent=0 // pred_check_branch
    %128 = sbr.rel (0) target = $region17
  $region16: #{transformer_forward.21} parent=0 // pred_region
    _
  $region17: #{transformer_forward.21} parent=0 // pred_fallthru
    _
  // Predicated region
  $region18: #{transformer_forward.21} parent=0 // pred_check
    _
  $region19: #{transformer_forward.21} parent=0 // pred_check_branch
    %130 = sbr.rel (0) target = $region21
  $region20: #{transformer_forward.21} parent=0 // pred_region
    _
  $region21: #{transformer_forward.21} parent=0 // pred_fallthru
    _

</llo_original>
